<compile_context>
chip_gen: v7x
topology: tpu7x:2x2x1
jax: 0.10.0
libtpu: 0.0.40
codegen_flags: <defaults>
</compile_context>

<pallas_src>
import functools

import jax
import jax.numpy as jnp
from jax.experimental import pallas as pl
from jax.experimental.pallas import tpu as pltpu


def _prefer_k_dot_accum():
    # v7x's MXU result buffer (MRB) accumulates in place, so per-tap dot
    # accumulation avoids materializing the (Bb*L, K*C) im2col temporary.
    # On v5e/v6e (MRF pop + VPU add per dot) the single long contraction wins.
    try:
        return "v7" in jax.devices()[0].device_kind.lower()
    except Exception:  # pragma: no cover - conservative fallback
        return False


# ----------------------------------------------------------------------------
# Fused kernel: 3 x (Conv1d "same" + BN + ReLU), intermediates in bf16 VMEM.
# ----------------------------------------------------------------------------
def fused_cnn_kernel(x_ref, w1_ref, b1_ref, w2_ref, b2_ref, w3_ref, b3_ref,
                     o_ref, h1_ref, h2_ref, *, L, K1, K2, K3, use_k_dots):
    # x_ref:  (Bb, L + K1 - 1, 1)  zero-padded raw input, f32
    # w1_ref: (K1, C)              BN-folded layer-1 taps, f32 (VPU path)
    # w{2,3}_ref: (K*C, C)         BN-folded conv weights, bf16 (MXU path),
    #                              row order = tap-major, cin-minor
    # b{i}_ref: (1, C)             folded BN shift (includes conv bias), f32
    # o_ref:  (Bb, L, C)           final activations, f32 (channels-last)
    # h1_ref: (Bb, L + K2 - 1, C)  bf16 scratch: layer-1 output + zero halo
    # h2_ref: (Bb, L + K3 - 1, C)  bf16 scratch: layer-2 output + zero halo
    Bb = o_ref.shape[0]
    C = o_ref.shape[2]
    pad2, pad3 = K2 // 2, K3 // 2

    def conv_mxu(h_ref, w_ref, b_ref, K):
        # h_ref holds the zero-halo-padded previous activations (bf16).
        if use_k_dots:
            # v7x: K shifted dots accumulated in f32 (MRB-friendly, no wide temp).
            acc = jnp.zeros((Bb * L, C), jnp.float32)
            for dk in range(K):
                xk = jnp.concatenate(
                    [h_ref[b, dk:dk + L, :] for b in range(Bb)], axis=0)
                acc = acc + jnp.dot(xk, w_ref[dk * C:(dk + 1) * C, :],
                                    preferred_element_type=jnp.float32)
        else:
            # v5e/v6e: one long im2col contraction (single MXU op, one drain).
            xcol = jnp.concatenate(
                [jnp.concatenate([h_ref[b, dk:dk + L, :] for dk in range(K)],
                                 axis=1)
                 for b in range(Bb)], axis=0)              # (Bb*L, K*C) bf16
            acc = jnp.dot(xcol, w_ref[...],
                          preferred_element_type=jnp.float32)
        return jnp.maximum(acc + b_ref[...], 0.0)          # (Bb*L, C) f32

    # ---- layer 1: Conv1d(1 -> C, K1) + BN + ReLU, as K1 shifted VPU FMAs ----
    h1_ref[...] = jnp.zeros(h1_ref.shape, h1_ref.dtype)    # zero-halo scratch
    w1 = w1_ref[...]                                       # (K1, C) f32
    b1 = b1_ref[...]                                       # (1, C)  f32
    for b in range(Bb):
        xb = x_ref[b]                                      # (L + K1 - 1, 1) f32
        y1 = jnp.zeros((L, C), jnp.float32)
        for k in range(K1):
            y1 = y1 + xb[k:k + L, :] * w1[k:k + 1, :]      # (L,1)*(1,C) FMA
        y1 = jnp.maximum(y1 + b1, 0.0)
        h1_ref[b, pad2:pad2 + L, :] = y1.astype(h1_ref.dtype)

    # ---- layer 2: Conv1d(C -> C, K2) + BN + ReLU (MXU) ----
    y2 = conv_mxu(h1_ref, w2_ref, b2_ref, K2).astype(h2_ref.dtype)
    h2_ref[...] = jnp.zeros(h2_ref.shape, h2_ref.dtype)    # zero-halo scratch
    for b in range(Bb):
        h2_ref[b, pad3:pad3 + L, :] = y2[b * L:(b + 1) * L, :]

    # ---- layer 3: Conv1d(C -> C, K3) + BN + ReLU (MXU) ----
    y3 = conv_mxu(h2_ref, w3_ref, b3_ref, K3)
    for b in range(Bb):
        o_ref[b, :, :] = y3[b * L:(b + 1) * L, :].astype(o_ref.dtype)


# ----------------------------------------------------------------------------
# Wrapper: pads x, picks the batch block, launches the fused kernel.
# ----------------------------------------------------------------------------
def cnn_feature_extractor(x, params, *, batch_block=None, use_k_dots=None):
    """x: (B, L) float32  ->  (B, L, out_channels), matching the PyTorch output."""
    B, L = x.shape
    K1, K2, K3 = params["ks"]
    C = params["b1"].shape[-1]
    pad1 = K1 // 2
    Lp = L + 2 * pad1

    if use_k_dots is None:
        use_k_dots = _prefer_k_dot_accum()
    if batch_block is None:
        # Pack batch elements into the matmul M dim (cap at 4 -> M = 4*L).
        batch_block = next(bb for bb in (4, 2, 1) if B % bb == 0)
    Bb = batch_block
    assert B % Bb == 0, (B, Bb)

    # Only wrapper op: zero-pad for the first "same" conv; (B, Lp, 1) f32.
    xp = jnp.pad(x, ((0, 0), (pad1, pad1)))[:, :, None]

    kernel = functools.partial(fused_cnn_kernel, L=L, K1=K1, K2=K2, K3=K3,
                               use_k_dots=use_k_dots)
    return pl.pallas_call(
        kernel,
        out_shape=jax.ShapeDtypeStruct((B, L, C), jnp.float32),
        grid=(B // Bb,),
        in_specs=[
            pl.BlockSpec((Bb, Lp, 1), lambda i: (i, 0, 0)),      # padded input
            pl.BlockSpec(params["w1"].shape, lambda i: (0, 0)),  # constants:
            pl.BlockSpec(params["b1"].shape, lambda i: (0, 0)),  #  constant
            pl.BlockSpec(params["w2"].shape, lambda i: (0, 0)),  #  index_map ->
            pl.BlockSpec(params["b2"].shape, lambda i: (0, 0)),  #  fetched once
            pl.BlockSpec(params["w3"].shape, lambda i: (0, 0)),
            pl.BlockSpec(params["b3"].shape, lambda i: (0, 0)),
        ],
        out_specs=pl.BlockSpec((Bb, L, C), lambda i: (i, 0, 0)),
        scratch_shapes=[
            pltpu.VMEM((Bb, L + K2 - 1, C), jnp.bfloat16),  # layer-1 act + halo
            pltpu.VMEM((Bb, L + K3 - 1, C), jnp.bfloat16),  # layer-2 act + halo
        ],
        compiler_params=pltpu.CompilerParams(
            dimension_semantics=("parallel",)),
    )(xp, params["w1"], params["b1"], params["w2"], params["b2"],
      params["w3"], params["b3"])


# ----------------------------------------------------------------------------
# Parameter construction (deterministic, mirrors the module's __init__ shapes).
# ----------------------------------------------------------------------------
def init_params(key, in_channels=1, out_channels=128, kernel_sizes=(7, 5, 3)):
    """Eval-mode params: BN scale folded into conv weights, BN shift (+ conv
    bias) kept as a per-channel shift.  Conv weights use PyTorch's default
    uniform init.
    NOTE (checkpoint import): PyTorch Conv1d weights are (Cout, Cin, K); they
    must be transposed to (K, Cin, Cout) BEFORE the reshape below so the row
    order stays tap-major / cin-minor, matching the kernel's im2col columns.
    """
    eps = 1e-5
    channels = [in_channels] + [out_channels] * len(kernel_sizes)
    params = {"ks": tuple(kernel_sizes)}
    for i, k in enumerate(kernel_sizes):
        cin, cout = channels[i], channels[i + 1]
        key, kw, kb = jax.random.split(key, 3)
        bound = 1.0 / float((cin * k) ** 0.5)
        w = jax.random.uniform(kw, (k, cin, cout), jnp.float32, -bound, bound)
        bias = jax.random.uniform(kb, (cout,), jnp.float32, -bound, bound)
        # BatchNorm1d eval defaults: gamma=1, beta=0, running_mean=0, running_var=1.
        gamma = jnp.ones((cout,), jnp.float32)
        beta = jnp.zeros((cout,), jnp.float32)
        r_mean = jnp.zeros((cout,), jnp.float32)
        r_var = jnp.ones((cout,), jnp.float32)
        scale = gamma / jnp.sqrt(r_var + eps)
        shift = beta + scale * (bias - r_mean)

        w_folded = (w * scale[None, None, :]).reshape(k * cin, cout)
        if i == 0:
            params["w1"] = w_folded.astype(jnp.float32)        # (K1, C), VPU path
        else:
            params[f"w{i + 1}"] = w_folded.astype(jnp.bfloat16)  # (K*C, C), MXU path
        params[f"b{i + 1}"] = shift.reshape(1, cout).astype(jnp.float32)
    return params


# ----------------------------------------------------------------------------
# Pure-JAX reference (same folded params) for a tolerance check.
# ----------------------------------------------------------------------------
def reference_forward(x, params):
    B, L = x.shape
    K1, K2, K3 = params["ks"]
    pad1 = K1 // 2
    w1 = params["w1"].astype(jnp.float32)                     # (K1, C)
    xp = jnp.pad(x, ((0, 0), (pad1, pad1)))
    h = sum(xp[:, k:k + L, None] * w1[k][None, None, :] for k in range(K1))
    h = jnp.maximum(h + params["b1"][0][None, None, :], 0.0)
    for w, bsh, K in ((params["w2"], params["b2"], K2),
                      (params["w3"], params["b3"], K3)):
        pad = K // 2
        hp = jnp.pad(h, ((0, 0), (pad, pad), (0, 0)))
        xcol = jnp.concatenate([hp[:, dk:dk + L, :] for dk in range(K)], axis=-1)
        h = jnp.einsum("blk,kc->blc", xcol, w.astype(jnp.float32),
                       precision=jax.lax.Precision.HIGHEST)
        h = jnp.maximum(h + bsh[0][None, None, :], 0.0)
    return h


if __name__ == "__main__":
    B, L = 2, 64
    in_channels, out_channels = 1, 128        # module defaults
    kernel_sizes = (7, 5, 3)

    key = jax.random.PRNGKey(0)
    key, kx = jax.random.split(key)
    x = jax.random.normal(kx, (B, L), jnp.float32)

    params = init_params(key, in_channels, out_channels, kernel_sizes)
    ref = reference_forward(x, params)

    # Exercise both MXU strategies (im2col contraction and per-tap K-dots).
    for k_dots in (False, True):
        run = jax.jit(functools.partial(cnn_feature_extractor, params=params,
                                        use_k_dots=k_dots))
        out = jax.block_until_ready(run(x))
        assert out.shape == (B, L, out_channels), out.shape
        assert out.dtype == jnp.float32
        err = float(jnp.max(jnp.abs(out - ref)))
        assert err < 5e-2, f"max abs err {err} (use_k_dots={k_dots})"

    print("KERNEL_OK")
</pallas_src>

<mosaic_0001>
module attributes {stable_mosaic.version = 11 : i64} {
  func.func @fused_cnn_kernel(%arg0: i32, %arg1: memref<2x70x1xf32, #tpu.memory_space<vmem>>, %arg2: memref<7x128xf32, #tpu.memory_space<vmem>>, %arg3: memref<1x128xf32, #tpu.memory_space<vmem>>, %arg4: memref<640x128xbf16, #tpu.memory_space<vmem>>, %arg5: memref<1x128xf32, #tpu.memory_space<vmem>>, %arg6: memref<384x128xbf16, #tpu.memory_space<vmem>>, %arg7: memref<1x128xf32, #tpu.memory_space<vmem>>, %arg8: memref<2x64x128xf32, #tpu.memory_space<vmem>>, %arg9: memref<2x68x128xbf16, #tpu.memory_space<vmem>>, %arg10: memref<2x66x128xbf16, #tpu.memory_space<vmem>>) attributes {dimension_semantics = [#tpu.dimension_semantics<parallel>], iteration_bounds = array<i64: 1>, scalar_prefetch = 0 : i64, scratch_operands = 2 : i64, tpu.core_type = #tpu.core_type<tc>, window_params = [{transform_indices = @transform_0, window_bounds = array<i64: 2, 70, 1>}, {pipeline_mode = #tpu.pipeline_mode<synchronous>, transform_indices = @transform_1, window_bounds = array<i64: 7, 128>}, {pipeline_mode = #tpu.pipeline_mode<synchronous>, transform_indices = @transform_2, window_bounds = array<i64: 1, 128>}, {pipeline_mode = #tpu.pipeline_mode<synchronous>, transform_indices = @transform_3, window_bounds = array<i64: 640, 128>}, {pipeline_mode = #tpu.pipeline_mode<synchronous>, transform_indices = @transform_4, window_bounds = array<i64: 1, 128>}, {pipeline_mode = #tpu.pipeline_mode<synchronous>, transform_indices = @transform_5, window_bounds = array<i64: 384, 128>}, {pipeline_mode = #tpu.pipeline_mode<synchronous>, transform_indices = @transform_6, window_bounds = array<i64: 1, 128>}, {transform_indices = @transform_7, window_bounds = array<i64: 2, 64, 128>}]} {
    %cst = arith.constant 0.000000e+00 : bf16
    %0 = vector.broadcast %cst : bf16 to vector<2x68x128xbf16>
    %c0 = arith.constant 0 : index
    %c0_0 = arith.constant 0 : index
    %c0_1 = arith.constant 0 : index
    %1 = vector.load %arg9[%c0, %c0_0, %c0_1] : memref<2x68x128xbf16, #tpu.memory_space<vmem>>, vector<2x68x128xbf16>
    tpu.vector_store %arg9[%c0, %c0_0, %c0_1], %0 {strides = array<i32>} : memref<2x68x128xbf16, #tpu.memory_space<vmem>>, vector<2x68x128xbf16>,
    %c0_2 = arith.constant 0 : index
    %c0_3 = arith.constant 0 : index
    %2 = vector.load %arg2[%c0_2, %c0_3] : memref<7x128xf32, #tpu.memory_space<vmem>>, vector<7x128xf32>
    %c0_4 = arith.constant 0 : index
    %c0_5 = arith.constant 0 : index
    %3 = vector.load %arg3[%c0_4, %c0_5] : memref<1x128xf32, #tpu.memory_space<vmem>>, vector<1x128xf32>
    %c0_6 = arith.constant 0 : index
    %c0_7 = arith.constant 0 : index
    %c0_8 = arith.constant 0 : index
    %4 = vector.load %arg1[%c0_6, %c0_7, %c0_8] : memref<2x70x1xf32, #tpu.memory_space<vmem>>, vector<1x70x1xf32>
    %5 = vector.shape_cast %4 : vector<1x70x1xf32> to vector<70x1xf32>
    %cst_9 = arith.constant 0.000000e+00 : f32
    %6 = vector.broadcast %cst_9 : f32 to vector<64x128xf32>
    %7 = vector.extract_strided_slice %5 {offsets = [0, 0], sizes = [64, 1], strides = [1, 1]} : vector<70x1xf32> to vector<64x1xf32>
    %8 = vector.extract_strided_slice %2 {offsets = [0, 0], sizes = [1, 128], strides = [1, 1]} : vector<7x128xf32> to vector<1x128xf32>
    %9 = vector.broadcast %7 : vector<64x1xf32> to vector<64x128xf32>
    %10 = vector.broadcast %8 : vector<1x128xf32> to vector<64x128xf32>
    %11 = arith.mulf %9, %10 : vector<64x128xf32>
    %12 = arith.addf %6, %11 : vector<64x128xf32>
    %13 = vector.extract_strided_slice %5 {offsets = [1, 0], sizes = [64, 1], strides = [1, 1]} : vector<70x1xf32> to vector<64x1xf32>
    %14 = vector.extract_strided_slice %2 {offsets = [1, 0], sizes = [1, 128], strides = [1, 1]} : vector<7x128xf32> to vector<1x128xf32>
    %15 = vector.broadcast %13 : vector<64x1xf32> to vector<64x128xf32>
    %16 = vector.broadcast %14 : vector<1x128xf32> to vector<64x128xf32>
    %17 = arith.mulf %15, %16 : vector<64x128xf32>
    %18 = arith.addf %12, %17 : vector<64x128xf32>
    %19 = vector.extract_strided_slice %5 {offsets = [2, 0], sizes = [64, 1], strides = [1, 1]} : vector<70x1xf32> to vector<64x1xf32>
    %20 = vector.extract_strided_slice %2 {offsets = [2, 0], sizes = [1, 128], strides = [1, 1]} : vector<7x128xf32> to vector<1x128xf32>
    %21 = vector.broadcast %19 : vector<64x1xf32> to vector<64x128xf32>
    %22 = vector.broadcast %20 : vector<1x128xf32> to vector<64x128xf32>
    %23 = arith.mulf %21, %22 : vector<64x128xf32>
    %24 = arith.addf %18, %23 : vector<64x128xf32>
    %25 = vector.extract_strided_slice %5 {offsets = [3, 0], sizes = [64, 1], strides = [1, 1]} : vector<70x1xf32> to vector<64x1xf32>
    %26 = vector.extract_strided_slice %2 {offsets = [3, 0], sizes = [1, 128], strides = [1, 1]} : vector<7x128xf32> to vector<1x128xf32>
    %27 = vector.broadcast %25 : vector<64x1xf32> to vector<64x128xf32>
    %28 = vector.broadcast %26 : vector<1x128xf32> to vector<64x128xf32>
    %29 = arith.mulf %27, %28 : vector<64x128xf32>
    %30 = arith.addf %24, %29 : vector<64x128xf32>
    %31 = vector.extract_strided_slice %5 {offsets = [4, 0], sizes = [64, 1], strides = [1, 1]} : vector<70x1xf32> to vector<64x1xf32>
    %32 = vector.extract_strided_slice %2 {offsets = [4, 0], sizes = [1, 128], strides = [1, 1]} : vector<7x128xf32> to vector<1x128xf32>
    %33 = vector.broadcast %31 : vector<64x1xf32> to vector<64x128xf32>
    %34 = vector.broadcast %32 : vector<1x128xf32> to vector<64x128xf32>
    %35 = arith.mulf %33, %34 : vector<64x128xf32>
    %36 = arith.addf %30, %35 : vector<64x128xf32>
    %37 = vector.extract_strided_slice %5 {offsets = [5, 0], sizes = [64, 1], strides = [1, 1]} : vector<70x1xf32> to vector<64x1xf32>
    %38 = vector.extract_strided_slice %2 {offsets = [5, 0], sizes = [1, 128], strides = [1, 1]} : vector<7x128xf32> to vector<1x128xf32>
    %39 = vector.broadcast %37 : vector<64x1xf32> to vector<64x128xf32>
    %40 = vector.broadcast %38 : vector<1x128xf32> to vector<64x128xf32>
    %41 = arith.mulf %39, %40 : vector<64x128xf32>
    %42 = arith.addf %36, %41 : vector<64x128xf32>
    %43 = vector.extract_strided_slice %5 {offsets = [6, 0], sizes = [64, 1], strides = [1, 1]} : vector<70x1xf32> to vector<64x1xf32>
    %44 = vector.extract_strided_slice %2 {offsets = [6, 0], sizes = [1, 128], strides = [1, 1]} : vector<7x128xf32> to vector<1x128xf32>
    %45 = vector.broadcast %43 : vector<64x1xf32> to vector<64x128xf32>
    %46 = vector.broadcast %44 : vector<1x128xf32> to vector<64x128xf32>
    %47 = arith.mulf %45, %46 : vector<64x128xf32>
    %48 = arith.addf %42, %47 : vector<64x128xf32>
    %49 = vector.broadcast %3 : vector<1x128xf32> to vector<64x128xf32>
    %50 = arith.addf %48, %49 : vector<64x128xf32>
    %cst_10 = arith.constant 0.000000e+00 : f32
    %51 = vector.broadcast %cst_10 : f32 to vector<64x128xf32>
    %52 = arith.maximumf %50, %51 : vector<64x128xf32>
    %53 = arith.truncf %52 : vector<64x128xf32> to vector<64x128xbf16>
    %c0_11 = arith.constant 0 : index
    %c2 = arith.constant 2 : index
    %c0_12 = arith.constant 0 : index
    %54 = vector.load %arg9[%c0_11, %c2, %c0_12] : memref<2x68x128xbf16, #tpu.memory_space<vmem>>, vector<1x64x128xbf16>
    %55 = vector.shape_cast %54 : vector<1x64x128xbf16> to vector<64x128xbf16>
    %56 = vector.shape_cast %53 : vector<64x128xbf16> to vector<1x64x128xbf16>
    tpu.vector_store %arg9[%c0_11, %c2, %c0_12], %56 {strides = array<i32>} : memref<2x68x128xbf16, #tpu.memory_space<vmem>>, vector<1x64x128xbf16>,
    %c1 = arith.constant 1 : index
    %c0_13 = arith.constant 0 : index
    %c0_14 = arith.constant 0 : index
    %57 = vector.load %arg1[%c1, %c0_13, %c0_14] : memref<2x70x1xf32, #tpu.memory_space<vmem>>, vector<1x70x1xf32>
    %58 = vector.shape_cast %57 : vector<1x70x1xf32> to vector<70x1xf32>
    %cst_15 = arith.constant 0.000000e+00 : f32
    %59 = vector.broadcast %cst_15 : f32 to vector<64x128xf32>
    %60 = vector.extract_strided_slice %58 {offsets = [0, 0], sizes = [64, 1], strides = [1, 1]} : vector<70x1xf32> to vector<64x1xf32>
    %61 = vector.extract_strided_slice %2 {offsets = [0, 0], sizes = [1, 128], strides = [1, 1]} : vector<7x128xf32> to vector<1x128xf32>
    %62 = vector.broadcast %60 : vector<64x1xf32> to vector<64x128xf32>
    %63 = vector.broadcast %61 : vector<1x128xf32> to vector<64x128xf32>
    %64 = arith.mulf %62, %63 : vector<64x128xf32>
    %65 = arith.addf %59, %64 : vector<64x128xf32>
    %66 = vector.extract_strided_slice %58 {offsets = [1, 0], sizes = [64, 1], strides = [1, 1]} : vector<70x1xf32> to vector<64x1xf32>
    %67 = vector.extract_strided_slice %2 {offsets = [1, 0], sizes = [1, 128], strides = [1, 1]} : vector<7x128xf32> to vector<1x128xf32>
    %68 = vector.broadcast %66 : vector<64x1xf32> to vector<64x128xf32>
    %69 = vector.broadcast %67 : vector<1x128xf32> to vector<64x128xf32>
    %70 = arith.mulf %68, %69 : vector<64x128xf32>
    %71 = arith.addf %65, %70 : vector<64x128xf32>
    %72 = vector.extract_strided_slice %58 {offsets = [2, 0], sizes = [64, 1], strides = [1, 1]} : vector<70x1xf32> to vector<64x1xf32>
    %73 = vector.extract_strided_slice %2 {offsets = [2, 0], sizes = [1, 128], strides = [1, 1]} : vector<7x128xf32> to vector<1x128xf32>
    %74 = vector.broadcast %72 : vector<64x1xf32> to vector<64x128xf32>
    %75 = vector.broadcast %73 : vector<1x128xf32> to vector<64x128xf32>
    %76 = arith.mulf %74, %75 : vector<64x128xf32>
    %77 = arith.addf %71, %76 : vector<64x128xf32>
    %78 = vector.extract_strided_slice %58 {offsets = [3, 0], sizes = [64, 1], strides = [1, 1]} : vector<70x1xf32> to vector<64x1xf32>
    %79 = vector.extract_strided_slice %2 {offsets = [3, 0], sizes = [1, 128], strides = [1, 1]} : vector<7x128xf32> to vector<1x128xf32>
    %80 = vector.broadcast %78 : vector<64x1xf32> to vector<64x128xf32>
    %81 = vector.broadcast %79 : vector<1x128xf32> to vector<64x128xf32>
    %82 = arith.mulf %80, %81 : vector<64x128xf32>
    %83 = arith.addf %77, %82 : vector<64x128xf32>
    %84 = vector.extract_strided_slice %58 {offsets = [4, 0], sizes = [64, 1], strides = [1, 1]} : vector<70x1xf32> to vector<64x1xf32>
    %85 = vector.extract_strided_slice %2 {offsets = [4, 0], sizes = [1, 128], strides = [1, 1]} : vector<7x128xf32> to vector<1x128xf32>
    %86 = vector.broadcast %84 : vector<64x1xf32> to vector<64x128xf32>
    %87 = vector.broadcast %85 : vector<1x128xf32> to vector<64x128xf32>
    %88 = arith.mulf %86, %87 : vector<64x128xf32>
    %89 = arith.addf %83, %88 : vector<64x128xf32>
    %90 = vector.extract_strided_slice %58 {offsets = [5, 0], sizes = [64, 1], strides = [1, 1]} : vector<70x1xf32> to vector<64x1xf32>
    %91 = vector.extract_strided_slice %2 {offsets = [5, 0], sizes = [1, 128], strides = [1, 1]} : vector<7x128xf32> to vector<1x128xf32>
    %92 = vector.broadcast %90 : vector<64x1xf32> to vector<64x128xf32>
    %93 = vector.broadcast %91 : vector<1x128xf32> to vector<64x128xf32>
    %94 = arith.mulf %92, %93 : vector<64x128xf32>
    %95 = arith.addf %89, %94 : vector<64x128xf32>
    %96 = vector.extract_strided_slice %58 {offsets = [6, 0], sizes = [64, 1], strides = [1, 1]} : vector<70x1xf32> to vector<64x1xf32>
    %97 = vector.extract_strided_slice %2 {offsets = [6, 0], sizes = [1, 128], strides = [1, 1]} : vector<7x128xf32> to vector<1x128xf32>
    %98 = vector.broadcast %96 : vector<64x1xf32> to vector<64x128xf32>
    %99 = vector.broadcast %97 : vector<1x128xf32> to vector<64x128xf32>
    %100 = arith.mulf %98, %99 : vector<64x128xf32>
    %101 = arith.addf %95, %100 : vector<64x128xf32>
    %102 = vector.broadcast %3 : vector<1x128xf32> to vector<64x128xf32>
    %103 = arith.addf %101, %102 : vector<64x128xf32>
    %cst_16 = arith.constant 0.000000e+00 : f32
    %104 = vector.broadcast %cst_16 : f32 to vector<64x128xf32>
    %105 = arith.maximumf %103, %104 : vector<64x128xf32>
    %106 = arith.truncf %105 : vector<64x128xf32> to vector<64x128xbf16>
    %c1_17 = arith.constant 1 : index
    %c2_18 = arith.constant 2 : index
    %c0_19 = arith.constant 0 : index
    %107 = vector.load %arg9[%c1_17, %c2_18, %c0_19] : memref<2x68x128xbf16, #tpu.memory_space<vmem>>, vector<1x64x128xbf16>
    %108 = vector.shape_cast %107 : vector<1x64x128xbf16> to vector<64x128xbf16>
    %109 = vector.shape_cast %106 : vector<64x128xbf16> to vector<1x64x128xbf16>
    tpu.vector_store %arg9[%c1_17, %c2_18, %c0_19], %109 {strides = array<i32>} : memref<2x68x128xbf16, #tpu.memory_space<vmem>>, vector<1x64x128xbf16>,
    %c0_20 = arith.constant 0 : index
    %c0_21 = arith.constant 0 : index
    %c0_22 = arith.constant 0 : index
    %110 = vector.load %arg9[%c0_20, %c0_21, %c0_22] : memref<2x68x128xbf16, #tpu.memory_space<vmem>>, vector<1x64x128xbf16>
    %111 = vector.shape_cast %110 : vector<1x64x128xbf16> to vector<64x128xbf16>
    %c0_23 = arith.constant 0 : index
    %c1_24 = arith.constant 1 : index
    %c0_25 = arith.constant 0 : index
    %112 = vector.load %arg9[%c0_23, %c1_24, %c0_25] : memref<2x68x128xbf16, #tpu.memory_space<vmem>>, vector<1x64x128xbf16>
    %113 = vector.shape_cast %112 : vector<1x64x128xbf16> to vector<64x128xbf16>
    %c0_26 = arith.constant 0 : index
    %c2_27 = arith.constant 2 : index
    %c0_28 = arith.constant 0 : index
    %114 = vector.load %arg9[%c0_26, %c2_27, %c0_28] : memref<2x68x128xbf16, #tpu.memory_space<vmem>>, vector<1x64x128xbf16>
    %115 = vector.shape_cast %114 : vector<1x64x128xbf16> to vector<64x128xbf16>
    %c0_29 = arith.constant 0 : index
    %c3 = arith.constant 3 : index
    %c0_30 = arith.constant 0 : index
    %116 = vector.load %arg9[%c0_29, %c3, %c0_30] : memref<2x68x128xbf16, #tpu.memory_space<vmem>>, vector<1x64x128xbf16>
    %117 = vector.shape_cast %116 : vector<1x64x128xbf16> to vector<64x128xbf16>
    %c0_31 = arith.constant 0 : index
    %c4 = arith.constant 4 : index
    %c0_32 = arith.constant 0 : index
    %118 = vector.load %arg9[%c0_31, %c4, %c0_32] : memref<2x68x128xbf16, #tpu.memory_space<vmem>>, vector<1x64x128xbf16>
    %119 = vector.shape_cast %118 : vector<1x64x128xbf16> to vector<64x128xbf16>
    %120 = tpu.concatenate %111, %113, %115, %117, %119 in 1 : vector<64x128xbf16>, vector<64x128xbf16>, vector<64x128xbf16>, vector<64x128xbf16>, vector<64x128xbf16> -> vector<64x640xbf16>
    %c1_33 = arith.constant 1 : index
    %c0_34 = arith.constant 0 : index
    %c0_35 = arith.constant 0 : index
    %121 = vector.load %arg9[%c1_33, %c0_34, %c0_35] : memref<2x68x128xbf16, #tpu.memory_space<vmem>>, vector<1x64x128xbf16>
    %122 = vector.shape_cast %121 : vector<1x64x128xbf16> to vector<64x128xbf16>
    %c1_36 = arith.constant 1 : index
    %c1_37 = arith.constant 1 : index
    %c0_38 = arith.constant 0 : index
    %123 = vector.load %arg9[%c1_36, %c1_37, %c0_38] : memref<2x68x128xbf16, #tpu.memory_space<vmem>>, vector<1x64x128xbf16>
    %124 = vector.shape_cast %123 : vector<1x64x128xbf16> to vector<64x128xbf16>
    %c1_39 = arith.constant 1 : index
    %c2_40 = arith.constant 2 : index
    %c0_41 = arith.constant 0 : index
    %125 = vector.load %arg9[%c1_39, %c2_40, %c0_41] : memref<2x68x128xbf16, #tpu.memory_space<vmem>>, vector<1x64x128xbf16>
    %126 = vector.shape_cast %125 : vector<1x64x128xbf16> to vector<64x128xbf16>
    %c1_42 = arith.constant 1 : index
    %c3_43 = arith.constant 3 : index
    %c0_44 = arith.constant 0 : index
    %127 = vector.load %arg9[%c1_42, %c3_43, %c0_44] : memref<2x68x128xbf16, #tpu.memory_space<vmem>>, vector<1x64x128xbf16>
    %128 = vector.shape_cast %127 : vector<1x64x128xbf16> to vector<64x128xbf16>
    %c1_45 = arith.constant 1 : index
    %c4_46 = arith.constant 4 : index
    %c0_47 = arith.constant 0 : index
    %129 = vector.load %arg9[%c1_45, %c4_46, %c0_47] : memref<2x68x128xbf16, #tpu.memory_space<vmem>>, vector<1x64x128xbf16>
    %130 = vector.shape_cast %129 : vector<1x64x128xbf16> to vector<64x128xbf16>
    %131 = tpu.concatenate %122, %124, %126, %128, %130 in 1 : vector<64x128xbf16>, vector<64x128xbf16>, vector<64x128xbf16>, vector<64x128xbf16>, vector<64x128xbf16> -> vector<64x640xbf16>
    %132 = tpu.concatenate %120, %131 in 0 : vector<64x640xbf16>, vector<64x640xbf16> -> vector<128x640xbf16>
    %c0_48 = arith.constant 0 : index
    %c0_49 = arith.constant 0 : index
    %133 = vector.load %arg4[%c0_48, %c0_49] : memref<640x128xbf16, #tpu.memory_space<vmem>>, vector<640x128xbf16>
    %cst_50 = arith.constant dense<0.000000e+00> : vector<128x128xf32>
    %134 = tpu.matmul %132, %133, %cst_50 {dimension_numbers = #tpu.dot_dimension_numbers<[1], [0], [0], [1], [0, 0, 1, 1], [], []>} : vector<128x640xbf16>, vector<640x128xbf16>, vector<128x128xf32> -> vector<128x128xf32>
    %c0_51 = arith.constant 0 : index
    %c0_52 = arith.constant 0 : index
    %135 = vector.load %arg5[%c0_51, %c0_52] : memref<1x128xf32, #tpu.memory_space<vmem>>, vector<1x128xf32>
    %136 = vector.broadcast %135 : vector<1x128xf32> to vector<128x128xf32>
    %137 = arith.addf %134, %136 : vector<128x128xf32>
    %cst_53 = arith.constant 0.000000e+00 : f32
    %138 = vector.broadcast %cst_53 : f32 to vector<128x128xf32>
    %139 = arith.maximumf %137, %138 : vector<128x128xf32>
    %140 = arith.truncf %139 : vector<128x128xf32> to vector<128x128xbf16>
    %cst_54 = arith.constant 0.000000e+00 : bf16
    %141 = vector.broadcast %cst_54 : bf16 to vector<2x66x128xbf16>
    %c0_55 = arith.constant 0 : index
    %c0_56 = arith.constant 0 : index
    %c0_57 = arith.constant 0 : index
    %142 = vector.load %arg10[%c0_55, %c0_56, %c0_57] : memref<2x66x128xbf16, #tpu.memory_space<vmem>>, vector<2x66x128xbf16>
    tpu.vector_store %arg10[%c0_55, %c0_56, %c0_57], %141 {strides = array<i32>} : memref<2x66x128xbf16, #tpu.memory_space<vmem>>, vector<2x66x128xbf16>,
    %143 = vector.extract_strided_slice %140 {offsets = [0, 0], sizes = [64, 128], strides = [1, 1]} : vector<128x128xbf16> to vector<64x128xbf16>
    %c0_58 = arith.constant 0 : index
    %c1_59 = arith.constant 1 : index
    %c0_60 = arith.constant 0 : index
    %144 = vector.load %arg10[%c0_58, %c1_59, %c0_60] : memref<2x66x128xbf16, #tpu.memory_space<vmem>>, vector<1x64x128xbf16>
    %145 = vector.shape_cast %144 : vector<1x64x128xbf16> to vector<64x128xbf16>
    %146 = vector.shape_cast %143 : vector<64x128xbf16> to vector<1x64x128xbf16>
    tpu.vector_store %arg10[%c0_58, %c1_59, %c0_60], %146 {strides = array<i32>} : memref<2x66x128xbf16, #tpu.memory_space<vmem>>, vector<1x64x128xbf16>,
    %147 = vector.extract_strided_slice %140 {offsets = [64, 0], sizes = [64, 128], strides = [1, 1]} : vector<128x128xbf16> to vector<64x128xbf16>
    %c1_61 = arith.constant 1 : index
    %c1_62 = arith.constant 1 : index
    %c0_63 = arith.constant 0 : index
    %148 = vector.load %arg10[%c1_61, %c1_62, %c0_63] : memref<2x66x128xbf16, #tpu.memory_space<vmem>>, vector<1x64x128xbf16>
    %149 = vector.shape_cast %148 : vector<1x64x128xbf16> to vector<64x128xbf16>
    %150 = vector.shape_cast %147 : vector<64x128xbf16> to vector<1x64x128xbf16>
    tpu.vector_store %arg10[%c1_61, %c1_62, %c0_63], %150 {strides = array<i32>} : memref<2x66x128xbf16, #tpu.memory_space<vmem>>, vector<1x64x128xbf16>,
    %c0_64 = arith.constant 0 : index
    %c0_65 = arith.constant 0 : index
    %c0_66 = arith.constant 0 : index
    %151 = vector.load %arg10[%c0_64, %c0_65, %c0_66] : memref<2x66x128xbf16, #tpu.memory_space<vmem>>, vector<1x64x128xbf16>
    %152 = vector.shape_cast %151 : vector<1x64x128xbf16> to vector<64x128xbf16>
    %c0_67 = arith.constant 0 : index
    %c1_68 = arith.constant 1 : index
    %c0_69 = arith.constant 0 : index
    %153 = vector.load %arg10[%c0_67, %c1_68, %c0_69] : memref<2x66x128xbf16, #tpu.memory_space<vmem>>, vector<1x64x128xbf16>
    %154 = vector.shape_cast %153 : vector<1x64x128xbf16> to vector<64x128xbf16>
    %c0_70 = arith.constant 0 : index
    %c2_71 = arith.constant 2 : index
    %c0_72 = arith.constant 0 : index
    %155 = vector.load %arg10[%c0_70, %c2_71, %c0_72] : memref<2x66x128xbf16, #tpu.memory_space<vmem>>, vector<1x64x128xbf16>
    %156 = vector.shape_cast %155 : vector<1x64x128xbf16> to vector<64x128xbf16>
    %157 = tpu.concatenate %152, %154, %156 in 1 : vector<64x128xbf16>, vector<64x128xbf16>, vector<64x128xbf16> -> vector<64x384xbf16>
    %c1_73 = arith.constant 1 : index
    %c0_74 = arith.constant 0 : index
    %c0_75 = arith.constant 0 : index
    %158 = vector.load %arg10[%c1_73, %c0_74, %c0_75] : memref<2x66x128xbf16, #tpu.memory_space<vmem>>, vector<1x64x128xbf16>
    %159 = vector.shape_cast %158 : vector<1x64x128xbf16> to vector<64x128xbf16>
    %c1_76 = arith.constant 1 : index
    %c1_77 = arith.constant 1 : index
    %c0_78 = arith.constant 0 : index
    %160 = vector.load %arg10[%c1_76, %c1_77, %c0_78] : memref<2x66x128xbf16, #tpu.memory_space<vmem>>, vector<1x64x128xbf16>
    %161 = vector.shape_cast %160 : vector<1x64x128xbf16> to vector<64x128xbf16>
    %c1_79 = arith.constant 1 : index
    %c2_80 = arith.constant 2 : index
    %c0_81 = arith.constant 0 : index
    %162 = vector.load %arg10[%c1_79, %c2_80, %c0_81] : memref<2x66x128xbf16, #tpu.memory_space<vmem>>, vector<1x64x128xbf16>
    %163 = vector.shape_cast %162 : vector<1x64x128xbf16> to vector<64x128xbf16>
    %164 = tpu.concatenate %159, %161, %163 in 1 : vector<64x128xbf16>, vector<64x128xbf16>, vector<64x128xbf16> -> vector<64x384xbf16>
    %165 = tpu.concatenate %157, %164 in 0 : vector<64x384xbf16>, vector<64x384xbf16> -> vector<128x384xbf16>
    %c0_82 = arith.constant 0 : index
    %c0_83 = arith.constant 0 : index
    %166 = vector.load %arg6[%c0_82, %c0_83] : memref<384x128xbf16, #tpu.memory_space<vmem>>, vector<384x128xbf16>
    %cst_84 = arith.constant dense<0.000000e+00> : vector<128x128xf32>
    %167 = tpu.matmul %165, %166, %cst_84 {dimension_numbers = #tpu.dot_dimension_numbers<[1], [0], [0], [1], [0, 0, 1, 1], [], []>} : vector<128x384xbf16>, vector<384x128xbf16>, vector<128x128xf32> -> vector<128x128xf32>
    %c0_85 = arith.constant 0 : index
    %c0_86 = arith.constant 0 : index
    %168 = vector.load %arg7[%c0_85, %c0_86] : memref<1x128xf32, #tpu.memory_space<vmem>>, vector<1x128xf32>
    %169 = vector.broadcast %168 : vector<1x128xf32> to vector<128x128xf32>
    %170 = arith.addf %167, %169 : vector<128x128xf32>
    %cst_87 = arith.constant 0.000000e+00 : f32
    %171 = vector.broadcast %cst_87 : f32 to vector<128x128xf32>
    %172 = arith.maximumf %170, %171 : vector<128x128xf32>
    %173 = vector.extract_strided_slice %172 {offsets = [0, 0], sizes = [64, 128], strides = [1, 1]} : vector<128x128xf32> to vector<64x128xf32>
    %c0_88 = arith.constant 0 : index
    %c0_89 = arith.constant 0 : index
    %c0_90 = arith.constant 0 : index
    %174 = vector.load %arg8[%c0_88, %c0_89, %c0_90] : memref<2x64x128xf32, #tpu.memory_space<vmem>>, vector<1x64x128xf32>
    %175 = vector.shape_cast %174 : vector<1x64x128xf32> to vector<64x128xf32>
    %176 = vector.shape_cast %173 : vector<64x128xf32> to vector<1x64x128xf32>
    tpu.vector_store %arg8[%c0_88, %c0_89, %c0_90], %176 {strides = array<i32>} : memref<2x64x128xf32, #tpu.memory_space<vmem>>, vector<1x64x128xf32>,
    %177 = vector.extract_strided_slice %172 {offsets = [64, 0], sizes = [64, 128], strides = [1, 1]} : vector<128x128xf32> to vector<64x128xf32>
    %c1_91 = arith.constant 1 : index
    %c0_92 = arith.constant 0 : index
    %c0_93 = arith.constant 0 : index
    %178 = vector.load %arg8[%c1_91, %c0_92, %c0_93] : memref<2x64x128xf32, #tpu.memory_space<vmem>>, vector<1x64x128xf32>
    %179 = vector.shape_cast %178 : vector<1x64x128xf32> to vector<64x128xf32>
    %180 = vector.shape_cast %177 : vector<64x128xf32> to vector<1x64x128xf32>
    tpu.vector_store %arg8[%c1_91, %c0_92, %c0_93], %180 {strides = array<i32>} : memref<2x64x128xf32, #tpu.memory_space<vmem>>, vector<1x64x128xf32>,
    return
  }
  func.func @transform_0(%arg0: i32) -> (i32, i32, i32) {
    %c0_i32 = arith.constant 0 : i32
    %c0_i32_0 = arith.constant 0 : i32
    %c0_i32_1 = arith.constant 0 : i32
    return %arg0, %c0_i32, %c0_i32_0 : i32, i32, i32
  }
  func.func @transform_1(%arg0: i32) -> (i32, i32) {
    %c0_i32 = arith.constant 0 : i32
    %c0_i32_0 = arith.constant 0 : i32
    %c0_i32_1 = arith.constant 0 : i32
    return %c0_i32, %c0_i32_0 : i32, i32
  }
  func.func @transform_2(%arg0: i32) -> (i32, i32) {
    %c0_i32 = arith.constant 0 : i32
    %c0_i32_0 = arith.constant 0 : i32
    %c0_i32_1 = arith.constant 0 : i32
    return %c0_i32, %c0_i32_0 : i32, i32
  }
  func.func @transform_3(%arg0: i32) -> (i32, i32) {
    %c0_i32 = arith.constant 0 : i32
    %c0_i32_0 = arith.constant 0 : i32
    %c0_i32_1 = arith.constant 0 : i32
    return %c0_i32, %c0_i32_0 : i32, i32
  }
  func.func @transform_4(%arg0: i32) -> (i32, i32) {
    %c0_i32 = arith.constant 0 : i32
    %c0_i32_0 = arith.constant 0 : i32
    %c0_i32_1 = arith.constant 0 : i32
    return %c0_i32, %c0_i32_0 : i32, i32
  }
  func.func @transform_5(%arg0: i32) -> (i32, i32) {
    %c0_i32 = arith.constant 0 : i32
    %c0_i32_0 = arith.constant 0 : i32
    %c0_i32_1 = arith.constant 0 : i32
    return %c0_i32, %c0_i32_0 : i32, i32
  }
  func.func @transform_6(%arg0: i32) -> (i32, i32) {
    %c0_i32 = arith.constant 0 : i32
    %c0_i32_0 = arith.constant 0 : i32
    %c0_i32_1 = arith.constant 0 : i32
    return %c0_i32, %c0_i32_0 : i32, i32
  }
  func.func @transform_7(%arg0: i32) -> (i32, i32, i32) {
    %c0_i32 = arith.constant 0 : i32
    %c0_i32_0 = arith.constant 0 : i32
    %c0_i32_1 = arith.constant 0 : i32
    return %arg0, %c0_i32, %c0_i32_0 : i32, i32, i32
  }
}

</mosaic_0001>

<llo_original>
// kernel: cnn_feature_extractor.1
$region0: #{cnn_feature_extractor.1}
  #allocation0 [shape = 'u32[]', space=smem, size = 0x4, offset = 0x4, fixed_abs, tag = 'smem constant byte address 0x4 - core index']
  #allocation1 [shape = 'u32[144,128]{1,0:T(1,128)}', space=vmem, size = 0x12000, scoped, tag = 'internal scratch']
  #allocation2 [shape = 'bf16[2,68,128]{2,1,0:T(8,128)(2,1)}', space=vmem, size = 0x9000, scoped, tag = 'scratch operand']
  #allocation3 [shape = 'bf16[2,66,128]{2,1,0:T(8,128)(2,1)}', space=vmem, size = 0x9000, scoped, tag = 'scratch operand']
  %s0 = inlined_call_operand.vmem [shape: f32[2,70,1], index: 0, kind: input, shape index: {}]
  %s1 = inlined_call_operand.vmem [shape: f32[7,128], index: 1, kind: input, shape index: {}]
  %s2 = inlined_call_operand.vmem [shape: f32[1,128], index: 2, kind: input, shape index: {}]
  %s3 = inlined_call_operand.hbm [shape: bf16[640,128], index: 3, kind: input, shape index: {}]
  %s4 = inlined_call_operand.vmem [shape: f32[1,128], index: 4, kind: input, shape index: {}]
  %s5 = inlined_call_operand.hbm [shape: bf16[384,128], index: 5, kind: input, shape index: {}]
  %s6 = inlined_call_operand.vmem [shape: f32[1,128], index: 6, kind: input, shape index: {}]
  %s7 = inlined_call_operand.hbm [shape: f32[2,64,128], index: 7, kind: output, shape index: {}]
  %s8 = sld [smem:[#allocation0]]
  $region46: #{cnn_feature_extractor.1} parent=0
    _
  %s10 = ssub.s32 1, %s8
  %s11 = scalar_select 0, %s10, %s8
  $region1: #{cnn_feature_extractor.1} parent=0
    #allocation4 [shape = 'u8[163840]{0}', space=vmem, size = 0x28000, scoped, tag = 'input window, operand 3, single buffered']
    #allocation5 [shape = 's32[1]{0}', space=sflag, size = 0x4, scoped, tag = 'scoped memory for cnn_feature_extractor.1']
    #allocation6 [shape = 's32[1]{0}', space=sflag, size = 0x4, scoped, tag = 'scoped memory for cnn_feature_extractor.1']
    #allocation7 [shape = 'u8[98304]{0}', space=vmem, size = 0x18000, scoped, tag = 'input window, operand 5, single buffered']
    #allocation8 [shape = 's32[1]{0}', space=sflag, size = 0x4, scoped, tag = 'scoped memory for cnn_feature_extractor.1']
    #allocation9 [shape = 'u8[65536]{0}', space=vmem, size = 0x10000, scoped, tag = 'output window, operand 0, single buffered']
    %12 = vsyncpa [#allocation5], 0
    %13 = vsyncpa [#allocation8], 0
    %14 = vsyncpa [#allocation6], 0
    // Predicated region
    $region2: #{cnn_feature_extractor.1} parent=1 // pred_check
      _
    $region3: #{cnn_feature_extractor.1} parent=1 // pred_check_branch
      %16 = sbr.rel (0) target = $region5
    $region4: #{cnn_feature_extractor.1} parent=1 // pred_region
      _
    $region5: #{cnn_feature_extractor.1} parent=1 // pred_fallthru
      _
    // Predicated region
    $region6: #{cnn_feature_extractor.1} parent=1 // pred_check
      _
    $region7: #{cnn_feature_extractor.1} parent=1 // pred_check_branch
      %18 = sbr.rel (0) target = $region9
    $region8: #{cnn_feature_extractor.1} parent=1 // pred_region
      _
    $region9: #{cnn_feature_extractor.1} parent=1 // pred_fallthru
      _
    // Predicated region
    $region10: #{cnn_feature_extractor.1} parent=1 // pred_check
      _
    $region11: #{cnn_feature_extractor.1} parent=1 // pred_check_branch
      %20 = sbr.rel (0) target = $region13
    $region12: #{cnn_feature_extractor.1} parent=1 // pred_region
      _
    $region13: #{cnn_feature_extractor.1} parent=1 // pred_fallthru
      _
    // Predicated region
    $region14: #{cnn_feature_extractor.1} parent=1 // pred_check
      _
    $region15: #{cnn_feature_extractor.1} parent=1 // pred_check_branch
      %22 = sbr.rel (0) target = $region17
    $region16: #{cnn_feature_extractor.1} parent=1 // pred_region
      %s24 = ssub.s32 5120, 5120
      %25 = vsyncadd [#allocation5], %s24
      %s26 = sshll.u32 [#allocation4], 4
      %s27 = int_to_ptr.vmem [resolvable:$true] %s26
      %32 = dma.hbm_to_vmem [thread:$0]  %s3, 5120, %s27, [#allocation5], 64, 64, 4
    $region17: #{cnn_feature_extractor.1} parent=1 // pred_fallthru
      _
    // Predicated region
    $region18: #{cnn_feature_extractor.1} parent=1 // pred_check
      _
    $region19: #{cnn_feature_extractor.1} parent=1 // pred_check_branch
      %34 = sbr.rel (0) target = $region21
    $region20: #{cnn_feature_extractor.1} parent=1 // pred_region
      _
    $region21: #{cnn_feature_extractor.1} parent=1 // pred_fallthru
      _
    // Predicated region
    $region22: #{cnn_feature_extractor.1} parent=1 // pred_check
      _
    $region23: #{cnn_feature_extractor.1} parent=1 // pred_check_branch
      %36 = sbr.rel (0) target = $region25
    $region24: #{cnn_feature_extractor.1} parent=1 // pred_region
      %s38 = ssub.s32 3072, 3072
      %39 = vsyncadd [#allocation8], %s38
      %s40 = sshll.u32 [#allocation7], 4
      %s41 = int_to_ptr.vmem [resolvable:$true] %s40
      %46 = dma.hbm_to_vmem [thread:$0]  %s5, 3072, %s41, [#allocation8], 64, 64, 4
    $region25: #{cnn_feature_extractor.1} parent=1 // pred_fallthru
      _
    // Predicated region
    $region26: #{cnn_feature_extractor.1} parent=1 // pred_check
      _
    $region27: #{cnn_feature_extractor.1} parent=1 // pred_check_branch
      %48 = sbr.rel (0) target = $region29
    $region28: #{cnn_feature_extractor.1} parent=1 // pred_region
      _
    $region29: #{cnn_feature_extractor.1} parent=1 // pred_fallthru
      _
    // Predicated region
    $region30: #{cnn_feature_extractor.1} parent=1 // pred_check
      _
    $region31: #{cnn_feature_extractor.1} parent=1 // pred_check_branch
      %50 = sbr.rel (0) target = $region33
    $region32: #{cnn_feature_extractor.1} parent=1 // pred_region
      %51 = dma.done [#allocation5], 5120
    $region33: #{cnn_feature_extractor.1} parent=1 // pred_fallthru
      _
    // Predicated region
    $region34: #{cnn_feature_extractor.1} parent=1 // pred_check
      _
    $region35: #{cnn_feature_extractor.1} parent=1 // pred_check_branch
      %53 = sbr.rel (0) target = $region37
    $region36: #{cnn_feature_extractor.1} parent=1 // pred_region
      %54 = dma.done [#allocation8], 3072
    $region37: #{cnn_feature_extractor.1} parent=1 // pred_fallthru
      _
    %56 = vst [vmem:[#allocation2] sm:$0xf] 0
    %57 = vst [vmem:[#allocation2 + $0x4] sm:$0xf] 0
    %58 = vst [vmem:[#allocation2 + $0x8] sm:$0xf] 0
    %59 = vst [vmem:[#allocation2 + $0xc] sm:$0xf] 0
    %60 = vst [vmem:[#allocation2 + $0x10] sm:$0xf] 0
    %61 = vst [vmem:[#allocation2 + $0x14] sm:$0xf] 0
    %62 = vst [vmem:[#allocation2 + $0x18] sm:$0xf] 0
    %63 = vst [vmem:[#allocation2 + $0x1c] sm:$0xf] 0
    %64 = vst [vmem:[#allocation2 + $0x20] sm:$0x3] 0
    %65 = vst [vmem:[#allocation2 + $0x24] sm:$0xf] 0
    %66 = vst [vmem:[#allocation2 + $0x28] sm:$0xf] 0
    %67 = vst [vmem:[#allocation2 + $0x2c] sm:$0xf] 0
    %68 = vst [vmem:[#allocation2 + $0x30] sm:$0xf] 0
    %69 = vst [vmem:[#allocation2 + $0x34] sm:$0xf] 0
    %70 = vst [vmem:[#allocation2 + $0x38] sm:$0xf] 0
    %71 = vst [vmem:[#allocation2 + $0x3c] sm:$0xf] 0
    %72 = vst [vmem:[#allocation2 + $0x40] sm:$0xf] 0
    %73 = vst [vmem:[#allocation2 + $0x44] sm:$0x3] 0
    %v74 = vld [vmem:[%s1] sm:$0x7f]
    %v75 = vld [vmem:[%s2] sm:$0x1]
    %v76 = vld [vmem:[%s0] sm:$0xff]
    %v77 = vld [vmem:[%s0 + $0x8] sm:$0xff]
    %v78 = vld [vmem:[%s0 + $0x10] sm:$0xff]
    %v79 = vld [vmem:[%s0 + $0x18] sm:$0xff]
    %v80 = vld [vmem:[%s0 + $0x20] sm:$0xff]
    %v81 = vld [vmem:[%s0 + $0x28] sm:$0xff]
    %v82 = vld [vmem:[%s0 + $0x30] sm:$0xff]
    %v83 = vld [vmem:[%s0 + $0x38] sm:$0xff]
    %v84 = vld [vmem:[%s0 + $0x40] sm:$0x3f]
    %86 = vset.pattern.permute.xlu0 0
    %87 = vperm.xlu0 %86, %v76
    %v88 = vpop.permute.xlu0 %87
    %91 = vset.pattern.permute.xlu0 0
    %92 = vperm.xlu0 %91, %v77
    %v93 = vpop.permute.xlu0 %92
    %96 = vset.pattern.permute.xlu0 0
    %97 = vperm.xlu0 %96, %v78
    %v98 = vpop.permute.xlu0 %97
    %101 = vset.pattern.permute.xlu0 0
    %102 = vperm.xlu0 %101, %v79
    %v103 = vpop.permute.xlu0 %102
    %106 = vset.pattern.permute.xlu0 0
    %107 = vperm.xlu0 %106, %v80
    %v108 = vpop.permute.xlu0 %107
    %111 = vset.pattern.permute.xlu0 0
    %112 = vperm.xlu0 %111, %v81
    %v113 = vpop.permute.xlu0 %112
    %116 = vset.pattern.permute.xlu0 0
    %117 = vperm.xlu0 %116, %v82
    %v118 = vpop.permute.xlu0 %117
    %121 = vset.pattern.permute.xlu0 0
    %122 = vperm.xlu0 %121, %v83
    %v123 = vpop.permute.xlu0 %122
    %v125 = vlaneseq
    %v126 = vshrl.u32 %v125, 7
    %v127 = vsub.s32 0, %v126
    %v128 = vrot.slane %v74, %v127
    %v129 = vmul.f32 %v88, %v128
    %v130 = vmul.f32 %v93, %v128
    %v131 = vmul.f32 %v98, %v128
    %v132 = vmul.f32 %v103, %v128
    %v133 = vmul.f32 %v108, %v128
    %v134 = vmul.f32 %v113, %v128
    %v135 = vmul.f32 %v118, %v128
    %v136 = vmul.f32 %v123, %v128
    %v137 = vadd.f32 %v129, 0.0
    %v138 = vadd.f32 %v130, 0.0
    %v139 = vadd.f32 %v131, 0.0
    %v140 = vadd.f32 %v132, 0.0
    %v141 = vadd.f32 %v133, 0.0
    %v142 = vadd.f32 %v134, 0.0
    %v143 = vadd.f32 %v135, 0.0
    %v144 = vadd.f32 %v136, 0.0
    %146 = vset.pattern.permute.xlu0 0
    %147 = vperm.xlu0 %146, %v84
    %v148 = vpop.permute.xlu0 %147
    %v150 = vlaneseq
    %v151 = vshrl.u32 %v150, 7
    %v152 = vsub.s32 1, %v151
    %v153 = vrot.slane %v74, %v152
    %v154 = vmul.f32 %v88, %v153
    %v155 = vmul.f32 %v93, %v153
    %v156 = vmul.f32 %v98, %v153
    %v157 = vmul.f32 %v103, %v153
    %v158 = vmul.f32 %v108, %v153
    %v159 = vmul.f32 %v113, %v153
    %v160 = vmul.f32 %v118, %v153
    %v161 = vmul.f32 %v123, %v153
    %v162 = vmul.f32 %v148, %v153
    %vm172 = vcmask 1046528
    %v173 = vrot.slane %v154, 1
    %v174 = vrot.slane %v155, 1
    %v175 = vsel %vm172, %v173, %v174
    %v176 = vrot.slane %v156, 1
    %v177 = vsel %vm172, %v174, %v176
    %v178 = vrot.slane %v157, 1
    %v179 = vsel %vm172, %v176, %v178
    %v180 = vrot.slane %v158, 1
    %v181 = vsel %vm172, %v178, %v180
    %v182 = vrot.slane %v159, 1
    %v183 = vsel %vm172, %v180, %v182
    %v184 = vrot.slane %v160, 1
    %v185 = vsel %vm172, %v182, %v184
    %v186 = vrot.slane %v161, 1
    %v187 = vsel %vm172, %v184, %v186
    %v188 = vrot.slane %v162, 1
    %v189 = vsel %vm172, %v186, %v188
    %v198 = vadd.f32 %v137, %v175
    %v199 = vadd.f32 %v138, %v177
    %v200 = vadd.f32 %v139, %v179
    %v201 = vadd.f32 %v140, %v181
    %v202 = vadd.f32 %v141, %v183
    %v203 = vadd.f32 %v142, %v185
    %v204 = vadd.f32 %v143, %v187
    %v205 = vadd.f32 %v144, %v189
    %v206 = vlaneseq
    %v207 = vshrl.u32 %v206, 7
    %v208 = vsub.s32 2, %v207
    %v209 = vrot.slane %v74, %v208
    %v210 = vmul.f32 %v88, %v209
    %v211 = vmul.f32 %v93, %v209
    %v212 = vmul.f32 %v98, %v209
    %v213 = vmul.f32 %v103, %v209
    %v214 = vmul.f32 %v108, %v209
    %v215 = vmul.f32 %v113, %v209
    %v216 = vmul.f32 %v118, %v209
    %v217 = vmul.f32 %v123, %v209
    %v218 = vmul.f32 %v148, %v209
    %vm228 = vcmask 1045504
    %v229 = vrot.slane %v210, 2
    %v230 = vrot.slane %v211, 2
    %v231 = vsel %vm228, %v229, %v230
    %v232 = vrot.slane %v212, 2
    %v233 = vsel %vm228, %v230, %v232
    %v234 = vrot.slane %v213, 2
    %v235 = vsel %vm228, %v232, %v234
    %v236 = vrot.slane %v214, 2
    %v237 = vsel %vm228, %v234, %v236
    %v238 = vrot.slane %v215, 2
    %v239 = vsel %vm228, %v236, %v238
    %v240 = vrot.slane %v216, 2
    %v241 = vsel %vm228, %v238, %v240
    %v242 = vrot.slane %v217, 2
    %v243 = vsel %vm228, %v240, %v242
    %v244 = vrot.slane %v218, 2
    %v245 = vsel %vm228, %v242, %v244
    %v254 = vadd.f32 %v198, %v231
    %v255 = vadd.f32 %v199, %v233
    %v256 = vadd.f32 %v200, %v235
    %v257 = vadd.f32 %v201, %v237
    %v258 = vadd.f32 %v202, %v239
    %v259 = vadd.f32 %v203, %v241
    %v260 = vadd.f32 %v204, %v243
    %v261 = vadd.f32 %v205, %v245
    %v262 = vlaneseq
    %v263 = vshrl.u32 %v262, 7
    %v264 = vsub.s32 3, %v263
    %v265 = vrot.slane %v74, %v264
    %v266 = vmul.f32 %v88, %v265
    %v267 = vmul.f32 %v93, %v265
    %v268 = vmul.f32 %v98, %v265
    %v269 = vmul.f32 %v103, %v265
    %v270 = vmul.f32 %v108, %v265
    %v271 = vmul.f32 %v113, %v265
    %v272 = vmul.f32 %v118, %v265
    %v273 = vmul.f32 %v123, %v265
    %v274 = vmul.f32 %v148, %v265
    %vm284 = vcmask 1044480
    %v285 = vrot.slane %v266, 3
    %v286 = vrot.slane %v267, 3
    %v287 = vsel %vm284, %v285, %v286
    %v288 = vrot.slane %v268, 3
    %v289 = vsel %vm284, %v286, %v288
    %v290 = vrot.slane %v269, 3
    %v291 = vsel %vm284, %v288, %v290
    %v292 = vrot.slane %v270, 3
    %v293 = vsel %vm284, %v290, %v292
    %v294 = vrot.slane %v271, 3
    %v295 = vsel %vm284, %v292, %v294
    %v296 = vrot.slane %v272, 3
    %v297 = vsel %vm284, %v294, %v296
    %v298 = vrot.slane %v273, 3
    %v299 = vsel %vm284, %v296, %v298
    %v300 = vrot.slane %v274, 3
    %v301 = vsel %vm284, %v298, %v300
    %v310 = vadd.f32 %v254, %v287
    %v311 = vadd.f32 %v255, %v289
    %v312 = vadd.f32 %v256, %v291
    %v313 = vadd.f32 %v257, %v293
    %v314 = vadd.f32 %v258, %v295
    %v315 = vadd.f32 %v259, %v297
    %v316 = vadd.f32 %v260, %v299
    %v317 = vadd.f32 %v261, %v301
    %v318 = vlaneseq
    %v319 = vshrl.u32 %v318, 7
    %v320 = vsub.s32 4, %v319
    %v321 = vrot.slane %v74, %v320
    %v322 = vmul.f32 %v88, %v321
    %v323 = vmul.f32 %v93, %v321
    %v324 = vmul.f32 %v98, %v321
    %v325 = vmul.f32 %v103, %v321
    %v326 = vmul.f32 %v108, %v321
    %v327 = vmul.f32 %v113, %v321
    %v328 = vmul.f32 %v118, %v321
    %v329 = vmul.f32 %v123, %v321
    %v330 = vmul.f32 %v148, %v321
    %vm340 = vcmask 1043456
    %v341 = vrot.slane %v322, 4
    %v342 = vrot.slane %v323, 4
    %v343 = vsel %vm340, %v341, %v342
    %v344 = vrot.slane %v324, 4
    %v345 = vsel %vm340, %v342, %v344
    %v346 = vrot.slane %v325, 4
    %v347 = vsel %vm340, %v344, %v346
    %v348 = vrot.slane %v326, 4
    %v349 = vsel %vm340, %v346, %v348
    %v350 = vrot.slane %v327, 4
    %v351 = vsel %vm340, %v348, %v350
    %v352 = vrot.slane %v328, 4
    %v353 = vsel %vm340, %v350, %v352
    %v354 = vrot.slane %v329, 4
    %v355 = vsel %vm340, %v352, %v354
    %v356 = vrot.slane %v330, 4
    %v357 = vsel %vm340, %v354, %v356
    %v366 = vadd.f32 %v310, %v343
    %v367 = vadd.f32 %v311, %v345
    %v368 = vadd.f32 %v312, %v347
    %v369 = vadd.f32 %v313, %v349
    %v370 = vadd.f32 %v314, %v351
    %v371 = vadd.f32 %v315, %v353
    %v372 = vadd.f32 %v316, %v355
    %v373 = vadd.f32 %v317, %v357
    %v374 = vlaneseq
    %v375 = vshrl.u32 %v374, 7
    %v376 = vsub.s32 5, %v375
    %v377 = vrot.slane %v74, %v376
    %v378 = vmul.f32 %v88, %v377
    %v379 = vmul.f32 %v93, %v377
    %v380 = vmul.f32 %v98, %v377
    %v381 = vmul.f32 %v103, %v377
    %v382 = vmul.f32 %v108, %v377
    %v383 = vmul.f32 %v113, %v377
    %v384 = vmul.f32 %v118, %v377
    %v385 = vmul.f32 %v123, %v377
    %v386 = vmul.f32 %v148, %v377
    %vm396 = vcmask 1042432
    %v397 = vrot.slane %v378, 5
    %v398 = vrot.slane %v379, 5
    %v399 = vsel %vm396, %v397, %v398
    %v400 = vrot.slane %v380, 5
    %v401 = vsel %vm396, %v398, %v400
    %v402 = vrot.slane %v381, 5
    %v403 = vsel %vm396, %v400, %v402
    %v404 = vrot.slane %v382, 5
    %v405 = vsel %vm396, %v402, %v404
    %v406 = vrot.slane %v383, 5
    %v407 = vsel %vm396, %v404, %v406
    %v408 = vrot.slane %v384, 5
    %v409 = vsel %vm396, %v406, %v408
    %v410 = vrot.slane %v385, 5
    %v411 = vsel %vm396, %v408, %v410
    %v412 = vrot.slane %v386, 5
    %v413 = vsel %vm396, %v410, %v412
    %v422 = vadd.f32 %v366, %v399
    %v423 = vadd.f32 %v367, %v401
    %v424 = vadd.f32 %v368, %v403
    %v425 = vadd.f32 %v369, %v405
    %v426 = vadd.f32 %v370, %v407
    %v427 = vadd.f32 %v371, %v409
    %v428 = vadd.f32 %v372, %v411
    %v429 = vadd.f32 %v373, %v413
    %v430 = vlaneseq
    %v431 = vshrl.u32 %v430, 7
    %v432 = vsub.s32 6, %v431
    %v433 = vrot.slane %v74, %v432
    %v434 = vmul.f32 %v88, %v433
    %v435 = vmul.f32 %v93, %v433
    %v436 = vmul.f32 %v98, %v433
    %v437 = vmul.f32 %v103, %v433
    %v438 = vmul.f32 %v108, %v433
    %v439 = vmul.f32 %v113, %v433
    %v440 = vmul.f32 %v118, %v433
    %v441 = vmul.f32 %v123, %v433
    %v442 = vmul.f32 %v148, %v433
    %vm452 = vcmask 1041408
    %v453 = vrot.slane %v434, 6
    %v454 = vrot.slane %v435, 6
    %v455 = vsel %vm452, %v453, %v454
    %v456 = vrot.slane %v436, 6
    %v457 = vsel %vm452, %v454, %v456
    %v458 = vrot.slane %v437, 6
    %v459 = vsel %vm452, %v456, %v458
    %v460 = vrot.slane %v438, 6
    %v461 = vsel %vm452, %v458, %v460
    %v462 = vrot.slane %v439, 6
    %v463 = vsel %vm452, %v460, %v462
    %v464 = vrot.slane %v440, 6
    %v465 = vsel %vm452, %v462, %v464
    %v466 = vrot.slane %v441, 6
    %v467 = vsel %vm452, %v464, %v466
    %v468 = vrot.slane %v442, 6
    %v469 = vsel %vm452, %v466, %v468
    %v478 = vadd.f32 %v422, %v455
    %v479 = vadd.f32 %v423, %v457
    %v480 = vadd.f32 %v424, %v459
    %v481 = vadd.f32 %v425, %v461
    %v482 = vadd.f32 %v426, %v463
    %v483 = vadd.f32 %v427, %v465
    %v484 = vadd.f32 %v428, %v467
    %v485 = vadd.f32 %v429, %v469
    %v487 = vlaneseq
    %v488 = vshrl.u32 %v487, 7
    %v489 = vsub.s32 0, %v488
    %v490 = vrot.slane %v75, %v489
    %v492 = vadd.f32 %v478, %v490
    %v493 = vadd.f32 %v479, %v490
    %v494 = vadd.f32 %v480, %v490
    %v495 = vadd.f32 %v481, %v490
    %v496 = vadd.f32 %v482, %v490
    %v497 = vadd.f32 %v483, %v490
    %v498 = vadd.f32 %v484, %v490
    %v499 = vadd.f32 %v485, %v490
    %v500 = vmax.f32 %v492, 0.0
    %v501 = vmax.f32 %v493, 0.0
    %v502 = vmax.f32 %v494, 0.0
    %v503 = vmax.f32 %v495, 0.0
    %v504 = vmax.f32 %v496, 0.0
    %v505 = vmax.f32 %v497, 0.0
    %v506 = vmax.f32 %v498, 0.0
    %v507 = vmax.f32 %v499, 0.0
    %v508 = vpack.c.bf16 %v501, %v500
    %v509 = vpack.c.bf16 %v503, %v502
    %v510 = vpack.c.bf16 %v505, %v504
    %v511 = vpack.c.bf16 %v507, %v506
    %v516 = vunpack.c.l.b16 %v508
    %v517 = vunpack.c.h.b16 %v508
    %v518 = vunpack.c.l.b16 %v509
    %v519 = vunpack.c.h.b16 %v509
    %v520 = vunpack.c.l.b16 %v510
    %v521 = vunpack.c.h.b16 %v510
    %v522 = vunpack.c.l.b16 %v511
    %v523 = vunpack.c.h.b16 %v511
    %v524 = vpack.c.b16 %v516, %v516
    %v525 = vpack.c.b16 %v517, %v517
    %v526 = vpack.c.b16 %v518, %v518
    %v527 = vpack.c.b16 %v519, %v519
    %v528 = vpack.c.b16 %v520, %v520
    %v529 = vpack.c.b16 %v521, %v521
    %v530 = vpack.c.b16 %v522, %v522
    %v531 = vpack.c.b16 %v523, %v523
    %vm532 = vcmask 1040384
    %vm533 = vcmask 1044484
    %vm534 = vmor %vm532, %vm533
    %v535 = vrot.slane %v524, 7
    %v536 = vrot.slane %v535, 4
    %v537 = vrot.slane %v525, 7
    %v538 = vsel %vm534, %v536, %v537
    %v539 = vrot.slane %v537, 4
    %v540 = vrot.slane %v526, 7
    %v541 = vsel %vm534, %v539, %v540
    %v542 = vrot.slane %v540, 4
    %v543 = vrot.slane %v527, 7
    %v544 = vsel %vm534, %v542, %v543
    %v545 = vrot.slane %v543, 4
    %v546 = vrot.slane %v528, 7
    %v547 = vsel %vm534, %v545, %v546
    %v548 = vrot.slane %v546, 4
    %v549 = vrot.slane %v529, 7
    %v550 = vsel %vm534, %v548, %v549
    %v551 = vrot.slane %v549, 4
    %v552 = vrot.slane %v530, 7
    %v553 = vsel %vm534, %v551, %v552
    %v554 = vrot.slane %v552, 4
    %v555 = vrot.slane %v531, 7
    %v556 = vsel %vm534, %v554, %v555
    %v557 = vrot.slane %v555, 4
    %567 = vst [vmem:[#allocation2] sm:$0xe] %v535
    %568 = vst [vmem:[#allocation2 + $0x4] sm:$0xf] %v538
    %569 = vst [vmem:[#allocation2 + $0x8] sm:$0xf] %v541
    %570 = vst [vmem:[#allocation2 + $0xc] sm:$0xf] %v544
    %571 = vst [vmem:[#allocation2 + $0x10] sm:$0xf] %v547
    %572 = vst [vmem:[#allocation2 + $0x14] sm:$0xf] %v550
    %573 = vst [vmem:[#allocation2 + $0x18] sm:$0xf] %v553
    %574 = vst [vmem:[#allocation2 + $0x1c] sm:$0xf] %v556
    %575 = vst [vmem:[#allocation2 + $0x20] sm:$0x1] %v557
    %s576 = scalar_lea.vmem %s0, 72
    %v577 = vld [vmem:[%s576] sm:$0xff]
    %v578 = vld [vmem:[%s576 + $0x8] sm:$0xff]
    %v579 = vld [vmem:[%s576 + $0x10] sm:$0xff]
    %v580 = vld [vmem:[%s576 + $0x18] sm:$0xff]
    %v581 = vld [vmem:[%s576 + $0x20] sm:$0xff]
    %v582 = vld [vmem:[%s576 + $0x28] sm:$0xff]
    %v583 = vld [vmem:[%s576 + $0x30] sm:$0xff]
    %v584 = vld [vmem:[%s576 + $0x38] sm:$0xff]
    %v585 = vld [vmem:[%s576 + $0x40] sm:$0x3f]
    %587 = vset.pattern.permute.xlu0 0
    %588 = vperm.xlu0 %587, %v577
    %v589 = vpop.permute.xlu0 %588
    %592 = vset.pattern.permute.xlu0 0
    %593 = vperm.xlu0 %592, %v578
    %v594 = vpop.permute.xlu0 %593
    %597 = vset.pattern.permute.xlu0 0
    %598 = vperm.xlu0 %597, %v579
    %v599 = vpop.permute.xlu0 %598
    %602 = vset.pattern.permute.xlu0 0
    %603 = vperm.xlu0 %602, %v580
    %v604 = vpop.permute.xlu0 %603
    %607 = vset.pattern.permute.xlu0 0
    %608 = vperm.xlu0 %607, %v581
    %v609 = vpop.permute.xlu0 %608
    %612 = vset.pattern.permute.xlu0 0
    %613 = vperm.xlu0 %612, %v582
    %v614 = vpop.permute.xlu0 %613
    %617 = vset.pattern.permute.xlu0 0
    %618 = vperm.xlu0 %617, %v583
    %v619 = vpop.permute.xlu0 %618
    %622 = vset.pattern.permute.xlu0 0
    %623 = vperm.xlu0 %622, %v584
    %v624 = vpop.permute.xlu0 %623
    %v626 = vmul.f32 %v589, %v128
    %v627 = vmul.f32 %v594, %v128
    %v628 = vmul.f32 %v599, %v128
    %v629 = vmul.f32 %v604, %v128
    %v630 = vmul.f32 %v609, %v128
    %v631 = vmul.f32 %v614, %v128
    %v632 = vmul.f32 %v619, %v128
    %v633 = vmul.f32 %v624, %v128
    %v634 = vadd.f32 %v626, 0.0
    %v635 = vadd.f32 %v627, 0.0
    %v636 = vadd.f32 %v628, 0.0
    %v637 = vadd.f32 %v629, 0.0
    %v638 = vadd.f32 %v630, 0.0
    %v639 = vadd.f32 %v631, 0.0
    %v640 = vadd.f32 %v632, 0.0
    %v641 = vadd.f32 %v633, 0.0
    %643 = vset.pattern.permute.xlu0 0
    %644 = vperm.xlu0 %643, %v585
    %v645 = vpop.permute.xlu0 %644
    %v647 = vmul.f32 %v589, %v153
    %v648 = vmul.f32 %v594, %v153
    %v649 = vmul.f32 %v599, %v153
    %v650 = vmul.f32 %v604, %v153
    %v651 = vmul.f32 %v609, %v153
    %v652 = vmul.f32 %v614, %v153
    %v653 = vmul.f32 %v619, %v153
    %v654 = vmul.f32 %v624, %v153
    %v655 = vmul.f32 %v645, %v153
    %v665 = vrot.slane %v647, 1
    %v666 = vrot.slane %v648, 1
    %v667 = vsel %vm172, %v665, %v666
    %v668 = vrot.slane %v649, 1
    %v669 = vsel %vm172, %v666, %v668
    %v670 = vrot.slane %v650, 1
    %v671 = vsel %vm172, %v668, %v670
    %v672 = vrot.slane %v651, 1
    %v673 = vsel %vm172, %v670, %v672
    %v674 = vrot.slane %v652, 1
    %v675 = vsel %vm172, %v672, %v674
    %v676 = vrot.slane %v653, 1
    %v677 = vsel %vm172, %v674, %v676
    %v678 = vrot.slane %v654, 1
    %v679 = vsel %vm172, %v676, %v678
    %v680 = vrot.slane %v655, 1
    %v681 = vsel %vm172, %v678, %v680
    %v690 = vadd.f32 %v634, %v667
    %v691 = vadd.f32 %v635, %v669
    %v692 = vadd.f32 %v636, %v671
    %v693 = vadd.f32 %v637, %v673
    %v694 = vadd.f32 %v638, %v675
    %v695 = vadd.f32 %v639, %v677
    %v696 = vadd.f32 %v640, %v679
    %v697 = vadd.f32 %v641, %v681
    %v698 = vmul.f32 %v589, %v209
    %v699 = vmul.f32 %v594, %v209
    %v700 = vmul.f32 %v599, %v209
    %v701 = vmul.f32 %v604, %v209
    %v702 = vmul.f32 %v609, %v209
    %v703 = vmul.f32 %v614, %v209
    %v704 = vmul.f32 %v619, %v209
    %v705 = vmul.f32 %v624, %v209
    %v706 = vmul.f32 %v645, %v209
    %v716 = vrot.slane %v698, 2
    %v717 = vrot.slane %v699, 2
    %v718 = vsel %vm228, %v716, %v717
    %v719 = vrot.slane %v700, 2
    %v720 = vsel %vm228, %v717, %v719
    %v721 = vrot.slane %v701, 2
    %v722 = vsel %vm228, %v719, %v721
    %v723 = vrot.slane %v702, 2
    %v724 = vsel %vm228, %v721, %v723
    %v725 = vrot.slane %v703, 2
    %v726 = vsel %vm228, %v723, %v725
    %v727 = vrot.slane %v704, 2
    %v728 = vsel %vm228, %v725, %v727
    %v729 = vrot.slane %v705, 2
    %v730 = vsel %vm228, %v727, %v729
    %v731 = vrot.slane %v706, 2
    %v732 = vsel %vm228, %v729, %v731
    %v741 = vadd.f32 %v690, %v718
    %v742 = vadd.f32 %v691, %v720
    %v743 = vadd.f32 %v692, %v722
    %v744 = vadd.f32 %v693, %v724
    %v745 = vadd.f32 %v694, %v726
    %v746 = vadd.f32 %v695, %v728
    %v747 = vadd.f32 %v696, %v730
    %v748 = vadd.f32 %v697, %v732
    %v749 = vmul.f32 %v589, %v265
    %v750 = vmul.f32 %v594, %v265
    %v751 = vmul.f32 %v599, %v265
    %v752 = vmul.f32 %v604, %v265
    %v753 = vmul.f32 %v609, %v265
    %v754 = vmul.f32 %v614, %v265
    %v755 = vmul.f32 %v619, %v265
    %v756 = vmul.f32 %v624, %v265
    %v757 = vmul.f32 %v645, %v265
    %v767 = vrot.slane %v749, 3
    %v768 = vrot.slane %v750, 3
    %v769 = vsel %vm284, %v767, %v768
    %v770 = vrot.slane %v751, 3
    %v771 = vsel %vm284, %v768, %v770
    %v772 = vrot.slane %v752, 3
    %v773 = vsel %vm284, %v770, %v772
    %v774 = vrot.slane %v753, 3
    %v775 = vsel %vm284, %v772, %v774
    %v776 = vrot.slane %v754, 3
    %v777 = vsel %vm284, %v774, %v776
    %v778 = vrot.slane %v755, 3
    %v779 = vsel %vm284, %v776, %v778
    %v780 = vrot.slane %v756, 3
    %v781 = vsel %vm284, %v778, %v780
    %v782 = vrot.slane %v757, 3
    %v783 = vsel %vm284, %v780, %v782
    %v792 = vadd.f32 %v741, %v769
    %v793 = vadd.f32 %v742, %v771
    %v794 = vadd.f32 %v743, %v773
    %v795 = vadd.f32 %v744, %v775
    %v796 = vadd.f32 %v745, %v777
    %v797 = vadd.f32 %v746, %v779
    %v798 = vadd.f32 %v747, %v781
    %v799 = vadd.f32 %v748, %v783
    %v800 = vmul.f32 %v589, %v321
    %v801 = vmul.f32 %v594, %v321
    %v802 = vmul.f32 %v599, %v321
    %v803 = vmul.f32 %v604, %v321
    %v804 = vmul.f32 %v609, %v321
    %v805 = vmul.f32 %v614, %v321
    %v806 = vmul.f32 %v619, %v321
    %v807 = vmul.f32 %v624, %v321
    %v808 = vmul.f32 %v645, %v321
    %v818 = vrot.slane %v800, 4
    %v819 = vrot.slane %v801, 4
    %v820 = vsel %vm340, %v818, %v819
    %v821 = vrot.slane %v802, 4
    %v822 = vsel %vm340, %v819, %v821
    %v823 = vrot.slane %v803, 4
    %v824 = vsel %vm340, %v821, %v823
    %v825 = vrot.slane %v804, 4
    %v826 = vsel %vm340, %v823, %v825
    %v827 = vrot.slane %v805, 4
    %v828 = vsel %vm340, %v825, %v827
    %v829 = vrot.slane %v806, 4
    %v830 = vsel %vm340, %v827, %v829
    %v831 = vrot.slane %v807, 4
    %v832 = vsel %vm340, %v829, %v831
    %v833 = vrot.slane %v808, 4
    %v834 = vsel %vm340, %v831, %v833
    %v843 = vadd.f32 %v792, %v820
    %v844 = vadd.f32 %v793, %v822
    %v845 = vadd.f32 %v794, %v824
    %v846 = vadd.f32 %v795, %v826
    %v847 = vadd.f32 %v796, %v828
    %v848 = vadd.f32 %v797, %v830
    %v849 = vadd.f32 %v798, %v832
    %v850 = vadd.f32 %v799, %v834
    %v851 = vmul.f32 %v589, %v377
    %v852 = vmul.f32 %v594, %v377
    %v853 = vmul.f32 %v599, %v377
    %v854 = vmul.f32 %v604, %v377
    %v855 = vmul.f32 %v609, %v377
    %v856 = vmul.f32 %v614, %v377
    %v857 = vmul.f32 %v619, %v377
    %v858 = vmul.f32 %v624, %v377
    %v859 = vmul.f32 %v645, %v377
    %v869 = vrot.slane %v851, 5
    %v870 = vrot.slane %v852, 5
    %v871 = vsel %vm396, %v869, %v870
    %v872 = vrot.slane %v853, 5
    %v873 = vsel %vm396, %v870, %v872
    %v874 = vrot.slane %v854, 5
    %v875 = vsel %vm396, %v872, %v874
    %v876 = vrot.slane %v855, 5
    %v877 = vsel %vm396, %v874, %v876
    %v878 = vrot.slane %v856, 5
    %v879 = vsel %vm396, %v876, %v878
    %v880 = vrot.slane %v857, 5
    %v881 = vsel %vm396, %v878, %v880
    %v882 = vrot.slane %v858, 5
    %v883 = vsel %vm396, %v880, %v882
    %v884 = vrot.slane %v859, 5
    %v885 = vsel %vm396, %v882, %v884
    %v894 = vadd.f32 %v843, %v871
    %v895 = vadd.f32 %v844, %v873
    %v896 = vadd.f32 %v845, %v875
    %v897 = vadd.f32 %v846, %v877
    %v898 = vadd.f32 %v847, %v879
    %v899 = vadd.f32 %v848, %v881
    %v900 = vadd.f32 %v849, %v883
    %v901 = vadd.f32 %v850, %v885
    %v902 = vmul.f32 %v589, %v433
    %v903 = vmul.f32 %v594, %v433
    %v904 = vmul.f32 %v599, %v433
    %v905 = vmul.f32 %v604, %v433
    %v906 = vmul.f32 %v609, %v433
    %v907 = vmul.f32 %v614, %v433
    %v908 = vmul.f32 %v619, %v433
    %v909 = vmul.f32 %v624, %v433
    %v910 = vmul.f32 %v645, %v433
    %v920 = vrot.slane %v902, 6
    %v921 = vrot.slane %v903, 6
    %v922 = vsel %vm452, %v920, %v921
    %v923 = vrot.slane %v904, 6
    %v924 = vsel %vm452, %v921, %v923
    %v925 = vrot.slane %v905, 6
    %v926 = vsel %vm452, %v923, %v925
    %v927 = vrot.slane %v906, 6
    %v928 = vsel %vm452, %v925, %v927
    %v929 = vrot.slane %v907, 6
    %v930 = vsel %vm452, %v927, %v929
    %v931 = vrot.slane %v908, 6
    %v932 = vsel %vm452, %v929, %v931
    %v933 = vrot.slane %v909, 6
    %v934 = vsel %vm452, %v931, %v933
    %v935 = vrot.slane %v910, 6
    %v936 = vsel %vm452, %v933, %v935
    %v945 = vadd.f32 %v894, %v922
    %v946 = vadd.f32 %v895, %v924
    %v947 = vadd.f32 %v896, %v926
    %v948 = vadd.f32 %v897, %v928
    %v949 = vadd.f32 %v898, %v930
    %v950 = vadd.f32 %v899, %v932
    %v951 = vadd.f32 %v900, %v934
    %v952 = vadd.f32 %v901, %v936
    %v953 = vadd.f32 %v945, %v490
    %v954 = vadd.f32 %v946, %v490
    %v955 = vadd.f32 %v947, %v490
    %v956 = vadd.f32 %v948, %v490
    %v957 = vadd.f32 %v949, %v490
    %v958 = vadd.f32 %v950, %v490
    %v959 = vadd.f32 %v951, %v490
    %v960 = vadd.f32 %v952, %v490
    %v961 = vmax.f32 %v953, 0.0
    %v962 = vmax.f32 %v954, 0.0
    %v963 = vmax.f32 %v955, 0.0
    %v964 = vmax.f32 %v956, 0.0
    %v965 = vmax.f32 %v957, 0.0
    %v966 = vmax.f32 %v958, 0.0
    %v967 = vmax.f32 %v959, 0.0
    %v968 = vmax.f32 %v960, 0.0
    %v969 = vpack.c.bf16 %v962, %v961
    %v970 = vpack.c.bf16 %v964, %v963
    %v971 = vpack.c.bf16 %v966, %v965
    %v972 = vpack.c.bf16 %v968, %v967
    %v977 = vunpack.c.l.b16 %v969
    %v978 = vunpack.c.h.b16 %v969
    %v979 = vunpack.c.l.b16 %v970
    %v980 = vunpack.c.h.b16 %v970
    %v981 = vunpack.c.l.b16 %v971
    %v982 = vunpack.c.h.b16 %v971
    %v983 = vunpack.c.l.b16 %v972
    %v984 = vunpack.c.h.b16 %v972
    %v985 = vpack.c.b16 %v977, %v977
    %v986 = vpack.c.b16 %v978, %v978
    %v987 = vpack.c.b16 %v979, %v979
    %v988 = vpack.c.b16 %v980, %v980
    %v989 = vpack.c.b16 %v981, %v981
    %v990 = vpack.c.b16 %v982, %v982
    %v991 = vpack.c.b16 %v983, %v983
    %v992 = vpack.c.b16 %v984, %v984
    %v993 = vrot.slane %v985, 7
    %v994 = vrot.slane %v993, 4
    %v995 = vrot.slane %v986, 7
    %v996 = vsel %vm534, %v994, %v995
    %v997 = vrot.slane %v995, 4
    %v998 = vrot.slane %v987, 7
    %v999 = vsel %vm534, %v997, %v998
    %v1000 = vrot.slane %v998, 4
    %v1001 = vrot.slane %v988, 7
    %v1002 = vsel %vm534, %v1000, %v1001
    %v1003 = vrot.slane %v1001, 4
    %v1004 = vrot.slane %v989, 7
    %v1005 = vsel %vm534, %v1003, %v1004
    %v1006 = vrot.slane %v1004, 4
    %v1007 = vrot.slane %v990, 7
    %v1008 = vsel %vm534, %v1006, %v1007
    %v1009 = vrot.slane %v1007, 4
    %v1010 = vrot.slane %v991, 7
    %v1011 = vsel %vm534, %v1009, %v1010
    %v1012 = vrot.slane %v1010, 4
    %v1013 = vrot.slane %v992, 7
    %v1014 = vsel %vm534, %v1012, %v1013
    %v1015 = vrot.slane %v1013, 4
    %s1025 = scalar_lea.vmem [#allocation2], 36
    %1026 = vst [vmem:[%s1025] sm:$0xe] %v993
    %1027 = vst [vmem:[%s1025 + $0x4] sm:$0xf] %v996
    %1028 = vst [vmem:[%s1025 + $0x8] sm:$0xf] %v999
    %1029 = vst [vmem:[%s1025 + $0xc] sm:$0xf] %v1002
    %1030 = vst [vmem:[%s1025 + $0x10] sm:$0xf] %v1005
    %1031 = vst [vmem:[%s1025 + $0x14] sm:$0xf] %v1008
    %1032 = vst [vmem:[%s1025 + $0x18] sm:$0xf] %v1011
    %1033 = vst [vmem:[%s1025 + $0x1c] sm:$0xf] %v1014
    %1034 = vst [vmem:[%s1025 + $0x20] sm:$0x1] %v1015
    %v1035 = vld [vmem:[#allocation2] sm:$0xf]
    %v1036 = vld [vmem:[#allocation2 + $0x4] sm:$0xf]
    %v1037 = vld [vmem:[#allocation2 + $0x8] sm:$0xf]
    %v1038 = vld [vmem:[#allocation2 + $0xc] sm:$0xf]
    %v1039 = vld [vmem:[#allocation2 + $0x10] sm:$0xf]
    %v1040 = vld [vmem:[#allocation2 + $0x14] sm:$0xf]
    %v1041 = vld [vmem:[#allocation2 + $0x18] sm:$0xf]
    %v1042 = vld [vmem:[#allocation2 + $0x1c] sm:$0xf]
    %v1043 = vld [vmem:[#allocation2 + $0x20] sm:$0x1]
    %v1044 = vld [vmem:[#allocation2] sm:$0xe]
    %v1045 = vld [vmem:[#allocation2 + $0x20] sm:$0x3]
    %v1046 = vld [vmem:[#allocation2] sm:$0xc]
    %v1055 = vunpack.c.l.b16 %v1035
    %v1056 = vunpack.c.l.b16 %v1036
    %v1057 = vunpack.c.l.b16 %v1037
    %v1058 = vunpack.c.l.b16 %v1038
    %v1059 = vunpack.c.l.b16 %v1039
    %v1060 = vunpack.c.l.b16 %v1040
    %v1061 = vunpack.c.l.b16 %v1041
    %v1062 = vunpack.c.l.b16 %v1042
    %v1063 = vpack.c.b16 %v1056, %v1055
    %v1064 = vpack.c.b16 %v1058, %v1057
    %v1065 = vpack.c.b16 %v1060, %v1059
    %v1066 = vpack.c.b16 %v1062, %v1061
    %v1072 = vunpack.c.l.b16 %v1043
    %v1073 = vpack.c.b16 %v1072, %v1072
    %vm1074 = vsmask.f32 7424
    %v1076 = vshrl.u32 %v1063, 16
    %v1078 = vshll.u32 %v1063, 16
    %v1080 = vrot.slane %v1078, 1
    %v1081 = vor.u32 %v1076, %v1080
    %v1083 = vshll.u32 %v1064, 16
    %v1085 = vrot.slane %v1083, 1
    %v1086 = vsel %vm1074, %v1081, %v1085
    %v1087 = vshrl.u32 %v1064, 16
    %v1089 = vor.u32 %v1087, %v1085
    %v1091 = vshll.u32 %v1065, 16
    %v1093 = vrot.slane %v1091, 1
    %v1094 = vsel %vm1074, %v1089, %v1093
    %v1095 = vshrl.u32 %v1065, 16
    %v1097 = vor.u32 %v1095, %v1093
    %v1099 = vshll.u32 %v1066, 16
    %v1101 = vrot.slane %v1099, 1
    %v1102 = vsel %vm1074, %v1097, %v1101
    %v1103 = vshrl.u32 %v1066, 16
    %v1105 = vor.u32 %v1103, %v1101
    %v1107 = vshll.u32 %v1073, 16
    %v1109 = vrot.slane %v1107, 1
    %v1110 = vsel %vm1074, %v1105, %v1109
    %v1116 = vunpack.c.l.b16 %v1044
    %v1117 = vpack.c.b16 %v1056, %v1116
    %vm1118 = vcmask 1046528
    %v1119 = vrot.slane %v1117, 1
    %v1120 = vrot.slane %v1064, 1
    %v1121 = vsel %vm1118, %v1119, %v1120
    %v1122 = vrot.slane %v1065, 1
    %v1123 = vsel %vm1118, %v1120, %v1122
    %v1124 = vrot.slane %v1066, 1
    %v1125 = vsel %vm1118, %v1122, %v1124
    %v1126 = vrot.slane %v1073, 1
    %v1127 = vsel %vm1118, %v1124, %v1126
    %v1133 = vunpack.c.l.b16 %v1045
    %v1134 = vpack.c.b16 %v1133, %v1133
    %vm1135 = vsmask.f32 6400
    %v1137 = vshrl.u32 %v1117, 16
    %v1139 = vrot.slane %v1137, 1
    %v1140 = vshll.u32 %v1117, 16
    %v1142 = vrot.slane %v1140, 2
    %v1143 = vor.u32 %v1139, %v1142
    %v1144 = vrot.slane %v1087, 1
    %v1145 = vrot.slane %v1083, 2
    %v1146 = vor.u32 %v1144, %v1145
    %v1147 = vsel %vm1135, %v1143, %v1146
    %v1148 = vrot.slane %v1095, 1
    %v1149 = vrot.slane %v1091, 2
    %v1150 = vor.u32 %v1148, %v1149
    %v1151 = vsel %vm1135, %v1146, %v1150
    %v1152 = vrot.slane %v1103, 1
    %v1153 = vrot.slane %v1099, 2
    %v1154 = vor.u32 %v1152, %v1153
    %v1155 = vsel %vm1135, %v1150, %v1154
    %v1157 = vshrl.u32 %v1134, 16
    %v1159 = vrot.slane %v1157, 1
    %v1160 = vshll.u32 %v1134, 16
    %v1162 = vrot.slane %v1160, 2
    %v1163 = vor.u32 %v1159, %v1162
    %v1164 = vsel %vm1135, %v1154, %v1163
    %v1170 = vunpack.c.l.b16 %v1046
    %v1171 = vpack.c.b16 %v1056, %v1170
    %vm1172 = vcmask 1045504
    %v1173 = vrot.slane %v1171, 2
    %v1174 = vrot.slane %v1064, 2
    %v1175 = vsel %vm1172, %v1173, %v1174
    %v1176 = vrot.slane %v1065, 2
    %v1177 = vsel %vm1172, %v1174, %v1176
    %v1178 = vrot.slane %v1066, 2
    %v1179 = vsel %vm1172, %v1176, %v1178
    %v1180 = vrot.slane %v1134, 2
    %v1181 = vsel %vm1172, %v1178, %v1180
    %v1186 = vld [vmem:[%s1025] sm:$0xf]
    %v1187 = vld [vmem:[%s1025 + $0x4] sm:$0xf]
    %v1188 = vld [vmem:[%s1025 + $0x8] sm:$0xf]
    %v1189 = vld [vmem:[%s1025 + $0xc] sm:$0xf]
    %v1190 = vld [vmem:[%s1025 + $0x10] sm:$0xf]
    %v1191 = vld [vmem:[%s1025 + $0x14] sm:$0xf]
    %v1192 = vld [vmem:[%s1025 + $0x18] sm:$0xf]
    %v1193 = vld [vmem:[%s1025 + $0x1c] sm:$0xf]
    %v1194 = vld [vmem:[%s1025 + $0x20] sm:$0x1]
    %v1195 = vld [vmem:[%s1025] sm:$0xe]
    %v1196 = vld [vmem:[%s1025 + $0x20] sm:$0x3]
    %v1197 = vld [vmem:[%s1025] sm:$0xc]
    %v1206 = vunpack.c.l.b16 %v1186
    %v1207 = vunpack.c.l.b16 %v1187
    %v1208 = vunpack.c.l.b16 %v1188
    %v1209 = vunpack.c.l.b16 %v1189
    %v1210 = vunpack.c.l.b16 %v1190
    %v1211 = vunpack.c.l.b16 %v1191
    %v1212 = vunpack.c.l.b16 %v1192
    %v1213 = vunpack.c.l.b16 %v1193
    %v1214 = vpack.c.b16 %v1207, %v1206
    %v1215 = vpack.c.b16 %v1209, %v1208
    %v1216 = vpack.c.b16 %v1211, %v1210
    %v1217 = vpack.c.b16 %v1213, %v1212
    %v1223 = vunpack.c.l.b16 %v1194
    %v1224 = vpack.c.b16 %v1223, %v1223
    %v1226 = vshrl.u32 %v1214, 16
    %v1228 = vshll.u32 %v1214, 16
    %v1230 = vrot.slane %v1228, 1
    %v1231 = vor.u32 %v1226, %v1230
    %v1233 = vshll.u32 %v1215, 16
    %v1235 = vrot.slane %v1233, 1
    %v1236 = vsel %vm1074, %v1231, %v1235
    %v1237 = vshrl.u32 %v1215, 16
    %v1239 = vor.u32 %v1237, %v1235
    %v1241 = vshll.u32 %v1216, 16
    %v1243 = vrot.slane %v1241, 1
    %v1244 = vsel %vm1074, %v1239, %v1243
    %v1245 = vshrl.u32 %v1216, 16
    %v1247 = vor.u32 %v1245, %v1243
    %v1249 = vshll.u32 %v1217, 16
    %v1251 = vrot.slane %v1249, 1
    %v1252 = vsel %vm1074, %v1247, %v1251
    %v1253 = vshrl.u32 %v1217, 16
    %v1255 = vor.u32 %v1253, %v1251
    %v1257 = vshll.u32 %v1224, 16
    %v1259 = vrot.slane %v1257, 1
    %v1260 = vsel %vm1074, %v1255, %v1259
    %v1266 = vunpack.c.l.b16 %v1195
    %v1267 = vpack.c.b16 %v1207, %v1266
    %v1268 = vrot.slane %v1267, 1
    %v1269 = vrot.slane %v1215, 1
    %v1270 = vsel %vm1118, %v1268, %v1269
    %v1271 = vrot.slane %v1216, 1
    %v1272 = vsel %vm1118, %v1269, %v1271
    %v1273 = vrot.slane %v1217, 1
    %v1274 = vsel %vm1118, %v1271, %v1273
    %v1275 = vrot.slane %v1224, 1
    %v1276 = vsel %vm1118, %v1273, %v1275
    %v1282 = vunpack.c.l.b16 %v1196
    %v1283 = vpack.c.b16 %v1282, %v1282
    %v1285 = vshrl.u32 %v1267, 16
    %v1287 = vrot.slane %v1285, 1
    %v1288 = vshll.u32 %v1267, 16
    %v1290 = vrot.slane %v1288, 2
    %v1291 = vor.u32 %v1287, %v1290
    %v1292 = vrot.slane %v1237, 1
    %v1293 = vrot.slane %v1233, 2
    %v1294 = vor.u32 %v1292, %v1293
    %v1295 = vsel %vm1135, %v1291, %v1294
    %v1296 = vrot.slane %v1245, 1
    %v1297 = vrot.slane %v1241, 2
    %v1298 = vor.u32 %v1296, %v1297
    %v1299 = vsel %vm1135, %v1294, %v1298
    %v1300 = vrot.slane %v1253, 1
    %v1301 = vrot.slane %v1249, 2
    %v1302 = vor.u32 %v1300, %v1301
    %v1303 = vsel %vm1135, %v1298, %v1302
    %v1305 = vshrl.u32 %v1283, 16
    %v1307 = vrot.slane %v1305, 1
    %v1308 = vshll.u32 %v1283, 16
    %v1310 = vrot.slane %v1308, 2
    %v1311 = vor.u32 %v1307, %v1310
    %v1312 = vsel %vm1135, %v1302, %v1311
    %v1318 = vunpack.c.l.b16 %v1197
    %v1319 = vpack.c.b16 %v1207, %v1318
    %v1320 = vrot.slane %v1319, 2
    %v1321 = vrot.slane %v1215, 2
    %v1322 = vsel %vm1172, %v1320, %v1321
    %v1323 = vrot.slane %v1216, 2
    %v1324 = vsel %vm1172, %v1321, %v1323
    %v1325 = vrot.slane %v1217, 2
    %v1326 = vsel %vm1172, %v1323, %v1325
    %v1327 = vrot.slane %v1283, 2
    %v1328 = vsel %vm1172, %v1325, %v1327
    %v1333 = vld [vmem:[#allocation4] sm:$0xf]
    %v1334 = vld [vmem:[#allocation4 + $0x4] sm:$0xf]
    %v1335 = vld [vmem:[#allocation4 + $0x8] sm:$0xf]
    %v1336 = vld [vmem:[#allocation4 + $0xc] sm:$0xf]
    %v1337 = vld [vmem:[#allocation4 + $0x10] sm:$0xf]
    %v1338 = vld [vmem:[#allocation4 + $0x14] sm:$0xf]
    %v1339 = vld [vmem:[#allocation4 + $0x18] sm:$0xf]
    %v1340 = vld [vmem:[#allocation4 + $0x1c] sm:$0xf]
    %v1341 = vld [vmem:[#allocation4 + $0x20] sm:$0xf]
    %v1342 = vld [vmem:[#allocation4 + $0x24] sm:$0xf]
    %v1343 = vld [vmem:[#allocation4 + $0x28] sm:$0xf]
    %v1344 = vld [vmem:[#allocation4 + $0x2c] sm:$0xf]
    %v1345 = vld [vmem:[#allocation4 + $0x30] sm:$0xf]
    %v1346 = vld [vmem:[#allocation4 + $0x34] sm:$0xf]
    %v1347 = vld [vmem:[#allocation4 + $0x38] sm:$0xf]
    %v1348 = vld [vmem:[#allocation4 + $0x3c] sm:$0xf]
    %v1349 = vld [vmem:[#allocation4 + $0x40] sm:$0xf]
    %v1350 = vld [vmem:[#allocation4 + $0x44] sm:$0xf]
    %v1351 = vld [vmem:[#allocation4 + $0x48] sm:$0xf]
    %v1352 = vld [vmem:[#allocation4 + $0x4c] sm:$0xf]
    %v1353 = vld [vmem:[#allocation4 + $0x50] sm:$0xf]
    %v1354 = vld [vmem:[#allocation4 + $0x54] sm:$0xf]
    %v1355 = vld [vmem:[#allocation4 + $0x58] sm:$0xf]
    %v1356 = vld [vmem:[#allocation4 + $0x5c] sm:$0xf]
    %v1357 = vld [vmem:[#allocation4 + $0x60] sm:$0xf]
    %v1358 = vld [vmem:[#allocation4 + $0x64] sm:$0xf]
    %v1359 = vld [vmem:[#allocation4 + $0x68] sm:$0xf]
    %v1360 = vld [vmem:[#allocation4 + $0x6c] sm:$0xf]
    %v1361 = vld [vmem:[#allocation4 + $0x70] sm:$0xf]
    %v1362 = vld [vmem:[#allocation4 + $0x74] sm:$0xf]
    %v1363 = vld [vmem:[#allocation4 + $0x78] sm:$0xf]
    %v1364 = vld [vmem:[#allocation4 + $0x7c] sm:$0xf]
    %v1365 = vld [vmem:[#allocation4 + $0x80] sm:$0xf]
    %v1366 = vld [vmem:[#allocation4 + $0x84] sm:$0xf]
    %v1367 = vld [vmem:[#allocation4 + $0x88] sm:$0xf]
    %v1368 = vld [vmem:[#allocation4 + $0x8c] sm:$0xf]
    %v1369 = vld [vmem:[#allocation4 + $0x90] sm:$0xf]
    %v1370 = vld [vmem:[#allocation4 + $0x94] sm:$0xf]
    %v1371 = vld [vmem:[#allocation4 + $0x98] sm:$0xf]
    %v1372 = vld [vmem:[#allocation4 + $0x9c] sm:$0xf]
    %v1373 = vld [vmem:[#allocation4 + $0xa0] sm:$0xf]
    %v1374 = vld [vmem:[#allocation4 + $0xa4] sm:$0xf]
    %v1375 = vld [vmem:[#allocation4 + $0xa8] sm:$0xf]
    %v1376 = vld [vmem:[#allocation4 + $0xac] sm:$0xf]
    %v1377 = vld [vmem:[#allocation4 + $0xb0] sm:$0xf]
    %v1378 = vld [vmem:[#allocation4 + $0xb4] sm:$0xf]
    %v1379 = vld [vmem:[#allocation4 + $0xb8] sm:$0xf]
    %v1380 = vld [vmem:[#allocation4 + $0xbc] sm:$0xf]
    %v1381 = vld [vmem:[#allocation4 + $0xc0] sm:$0xf]
    %v1382 = vld [vmem:[#allocation4 + $0xc4] sm:$0xf]
    %v1383 = vld [vmem:[#allocation4 + $0xc8] sm:$0xf]
    %v1384 = vld [vmem:[#allocation4 + $0xcc] sm:$0xf]
    %v1385 = vld [vmem:[#allocation4 + $0xd0] sm:$0xf]
    %v1386 = vld [vmem:[#allocation4 + $0xd4] sm:$0xf]
    %v1387 = vld [vmem:[#allocation4 + $0xd8] sm:$0xf]
    %v1388 = vld [vmem:[#allocation4 + $0xdc] sm:$0xf]
    %v1389 = vld [vmem:[#allocation4 + $0xe0] sm:$0xf]
    %v1390 = vld [vmem:[#allocation4 + $0xe4] sm:$0xf]
    %v1391 = vld [vmem:[#allocation4 + $0xe8] sm:$0xf]
    %v1392 = vld [vmem:[#allocation4 + $0xec] sm:$0xf]
    %v1393 = vld [vmem:[#allocation4 + $0xf0] sm:$0xf]
    %v1394 = vld [vmem:[#allocation4 + $0xf4] sm:$0xf]
    %v1395 = vld [vmem:[#allocation4 + $0xf8] sm:$0xf]
    %v1396 = vld [vmem:[#allocation4 + $0xfc] sm:$0xf]
    %v1397 = vld [vmem:[#allocation4 + $0x100] sm:$0xf]
    %v1398 = vld [vmem:[#allocation4 + $0x104] sm:$0xf]
    %v1399 = vld [vmem:[#allocation4 + $0x108] sm:$0xf]
    %v1400 = vld [vmem:[#allocation4 + $0x10c] sm:$0xf]
    %v1401 = vld [vmem:[#allocation4 + $0x110] sm:$0xf]
    %v1402 = vld [vmem:[#allocation4 + $0x114] sm:$0xf]
    %v1403 = vld [vmem:[#allocation4 + $0x118] sm:$0xf]
    %v1404 = vld [vmem:[#allocation4 + $0x11c] sm:$0xf]
    %v1405 = vld [vmem:[#allocation4 + $0x120] sm:$0xf]
    %v1406 = vld [vmem:[#allocation4 + $0x124] sm:$0xf]
    %v1407 = vld [vmem:[#allocation4 + $0x128] sm:$0xf]
    %v1408 = vld [vmem:[#allocation4 + $0x12c] sm:$0xf]
    %v1409 = vld [vmem:[#allocation4 + $0x130] sm:$0xf]
    %v1410 = vld [vmem:[#allocation4 + $0x134] sm:$0xf]
    %v1411 = vld [vmem:[#allocation4 + $0x138] sm:$0xf]
    %v1412 = vld [vmem:[#allocation4 + $0x13c] sm:$0xf]
    %v1413 = vld [vmem:[%s4] sm:$0x1]
    %v1415 = vlaneseq
    %v1416 = vshrl.u32 %v1415, 7
    %v1417 = vsub.s32 0, %v1416
    %v1418 = vrot.slane %v1413, %v1417
    %v1500 = vunpack.c.l.b16 %v1333
    %v1501 = vunpack.c.l.b16 %v1334
    %v1502 = vunpack.c.l.b16 %v1335
    %v1503 = vunpack.c.l.b16 %v1336
    %v1504 = vunpack.c.l.b16 %v1337
    %v1505 = vunpack.c.l.b16 %v1338
    %v1506 = vunpack.c.l.b16 %v1339
    %v1507 = vunpack.c.l.b16 %v1340
    %v1508 = vunpack.c.l.b16 %v1341
    %v1509 = vunpack.c.l.b16 %v1342
    %v1510 = vunpack.c.l.b16 %v1343
    %v1511 = vunpack.c.l.b16 %v1344
    %v1512 = vunpack.c.l.b16 %v1345
    %v1513 = vunpack.c.l.b16 %v1346
    %v1514 = vunpack.c.l.b16 %v1347
    %v1515 = vunpack.c.l.b16 %v1348
    %v1516 = vunpack.c.l.b16 %v1349
    %v1517 = vunpack.c.l.b16 %v1350
    %v1518 = vunpack.c.l.b16 %v1351
    %v1519 = vunpack.c.l.b16 %v1352
    %v1520 = vunpack.c.l.b16 %v1353
    %v1521 = vunpack.c.l.b16 %v1354
    %v1522 = vunpack.c.l.b16 %v1355
    %v1523 = vunpack.c.l.b16 %v1356
    %v1524 = vunpack.c.l.b16 %v1357
    %v1525 = vunpack.c.l.b16 %v1358
    %v1526 = vunpack.c.l.b16 %v1359
    %v1527 = vunpack.c.l.b16 %v1360
    %v1528 = vunpack.c.l.b16 %v1361
    %v1529 = vunpack.c.l.b16 %v1362
    %v1530 = vunpack.c.l.b16 %v1363
    %v1531 = vunpack.c.l.b16 %v1364
    %v1532 = vunpack.c.l.b16 %v1365
    %v1533 = vunpack.c.l.b16 %v1366
    %v1534 = vunpack.c.l.b16 %v1367
    %v1535 = vunpack.c.l.b16 %v1368
    %v1536 = vunpack.c.l.b16 %v1369
    %v1537 = vunpack.c.l.b16 %v1370
    %v1538 = vunpack.c.l.b16 %v1371
    %v1539 = vunpack.c.l.b16 %v1372
    %v1540 = vunpack.c.l.b16 %v1373
    %v1541 = vunpack.c.l.b16 %v1374
    %v1542 = vunpack.c.l.b16 %v1375
    %v1543 = vunpack.c.l.b16 %v1376
    %v1544 = vunpack.c.l.b16 %v1377
    %v1545 = vunpack.c.l.b16 %v1378
    %v1546 = vunpack.c.l.b16 %v1379
    %v1547 = vunpack.c.l.b16 %v1380
    %v1548 = vunpack.c.l.b16 %v1381
    %v1549 = vunpack.c.l.b16 %v1382
    %v1550 = vunpack.c.l.b16 %v1383
    %v1551 = vunpack.c.l.b16 %v1384
    %v1552 = vunpack.c.l.b16 %v1385
    %v1553 = vunpack.c.l.b16 %v1386
    %v1554 = vunpack.c.l.b16 %v1387
    %v1555 = vunpack.c.l.b16 %v1388
    %v1556 = vunpack.c.l.b16 %v1389
    %v1557 = vunpack.c.l.b16 %v1390
    %v1558 = vunpack.c.l.b16 %v1391
    %v1559 = vunpack.c.l.b16 %v1392
    %v1560 = vunpack.c.l.b16 %v1393
    %v1561 = vunpack.c.l.b16 %v1394
    %v1562 = vunpack.c.l.b16 %v1395
    %v1563 = vunpack.c.l.b16 %v1396
    %v1564 = vunpack.c.l.b16 %v1397
    %v1565 = vunpack.c.l.b16 %v1398
    %v1566 = vunpack.c.l.b16 %v1399
    %v1567 = vunpack.c.l.b16 %v1400
    %v1568 = vunpack.c.l.b16 %v1401
    %v1569 = vunpack.c.l.b16 %v1402
    %v1570 = vunpack.c.l.b16 %v1403
    %v1571 = vunpack.c.l.b16 %v1404
    %v1572 = vunpack.c.l.b16 %v1405
    %v1573 = vunpack.c.l.b16 %v1406
    %v1574 = vunpack.c.l.b16 %v1407
    %v1575 = vunpack.c.l.b16 %v1408
    %v1576 = vunpack.c.l.b16 %v1409
    %v1577 = vunpack.c.l.b16 %v1410
    %v1578 = vunpack.c.l.b16 %v1411
    %v1579 = vunpack.c.l.b16 %v1412
    %v1580 = vpack.c.b16 %v1501, %v1500
    %v1581 = vpack.c.b16 %v1503, %v1502
    %v1582 = vpack.c.b16 %v1505, %v1504
    %v1583 = vpack.c.b16 %v1507, %v1506
    %v1584 = vpack.c.b16 %v1509, %v1508
    %v1585 = vpack.c.b16 %v1511, %v1510
    %v1586 = vpack.c.b16 %v1513, %v1512
    %v1587 = vpack.c.b16 %v1515, %v1514
    %v1588 = vpack.c.b16 %v1517, %v1516
    %v1589 = vpack.c.b16 %v1519, %v1518
    %v1590 = vpack.c.b16 %v1521, %v1520
    %v1591 = vpack.c.b16 %v1523, %v1522
    %v1592 = vpack.c.b16 %v1525, %v1524
    %v1593 = vpack.c.b16 %v1527, %v1526
    %v1594 = vpack.c.b16 %v1529, %v1528
    %v1595 = vpack.c.b16 %v1531, %v1530
    %v1596 = vpack.c.b16 %v1533, %v1532
    %v1597 = vpack.c.b16 %v1535, %v1534
    %v1598 = vpack.c.b16 %v1537, %v1536
    %v1599 = vpack.c.b16 %v1539, %v1538
    %v1600 = vpack.c.b16 %v1541, %v1540
    %v1601 = vpack.c.b16 %v1543, %v1542
    %v1602 = vpack.c.b16 %v1545, %v1544
    %v1603 = vpack.c.b16 %v1547, %v1546
    %v1604 = vpack.c.b16 %v1549, %v1548
    %v1605 = vpack.c.b16 %v1551, %v1550
    %v1606 = vpack.c.b16 %v1553, %v1552
    %v1607 = vpack.c.b16 %v1555, %v1554
    %v1608 = vpack.c.b16 %v1557, %v1556
    %v1609 = vpack.c.b16 %v1559, %v1558
    %v1610 = vpack.c.b16 %v1561, %v1560
    %v1611 = vpack.c.b16 %v1563, %v1562
    %v1612 = vpack.c.b16 %v1565, %v1564
    %v1613 = vpack.c.b16 %v1567, %v1566
    %v1614 = vpack.c.b16 %v1569, %v1568
    %v1615 = vpack.c.b16 %v1571, %v1570
    %v1616 = vpack.c.b16 %v1573, %v1572
    %v1617 = vpack.c.b16 %v1575, %v1574
    %v1618 = vpack.c.b16 %v1577, %v1576
    %v1619 = vpack.c.b16 %v1579, %v1578
    %1660 = vmatprep.subr.bf16.mxu0 0
    %1661 = vmatpush1.bf16.msra.mxu0 %v1580
    %1662 = vmatprep.subr.bf16.mxu0 0
    %1663 = vmatpush1.bf16.msra.mxu0 %v1581
    %1664 = vmatprep.subr.bf16.mxu0 0
    %1665 = vmatpush1.bf16.msra.mxu0 %v1582
    %1666 = vmatprep.subr.bf16.mxu0 0
    %1667 = vmatpush1.bf16.msra.mxu0 %v1583
    %1668 = vmatprep.subr.bf16.mxu0 0
    %1669 = vmatpush1.bf16.msra.mxu0 %v1584
    %1670 = vmatprep.subr.bf16.mxu0 0
    %1671 = vmatpush1.bf16.msra.mxu0 %v1585
    %1672 = vmatprep.subr.bf16.mxu0 0
    %1673 = vmatpush1.bf16.msra.mxu0 %v1586
    %1674 = vmatprep.subr.bf16.mxu0 0
    %1675 = vmatpush1.bf16.msra.mxu0 %v1587
    %1676 = vmatprep.subr.bf16.mxu0 0
    %1677 = vmatpush1.bf16.msra.mxu0 %v1588
    %1678 = vmatprep.subr.bf16.mxu0 0
    %1679 = vmatpush1.bf16.msra.mxu0 %v1589
    %1680 = vmatprep.subr.bf16.mxu0 0
    %1681 = vmatpush1.bf16.msra.mxu0 %v1590
    %1682 = vmatprep.subr.bf16.mxu0 0
    %1683 = vmatpush1.bf16.msra.mxu0 %v1591
    %1684 = vmatprep.subr.bf16.mxu0 0
    %1685 = vmatpush1.bf16.msra.mxu0 %v1592
    %1686 = vmatprep.subr.bf16.mxu0 0
    %1687 = vmatpush1.bf16.msra.mxu0 %v1593
    %1688 = vmatprep.subr.bf16.mxu0 0
    %1689 = vmatpush1.bf16.msra.mxu0 %v1594
    %1690 = vmatprep.subr.bf16.mxu0 0
    %1691 = vmatpush1.bf16.msra.mxu0 %v1595
    %1692 = vmatprep.mubr.bf16.mxu0 %v1086
    %1693 = vmatmul.mubr.bf16.gmra.mrb[0].mxu0 %v1063
    %v1694 = vpop.f32.mrb[0].mxu0
    %v1695 = vadd.f32 %v1418, %v1694
    %v1696 = vpop.f32.mrb[0].mxu0
    %v1697 = vpop.f32.mrb[0].mxu0
    %v1698 = vadd.f32 %v1418, %v1697
    %v1699 = vpop.f32.mrb[0].mxu0
    %1700 = vmatprep.mubr.bf16.mxu0 %v1094
    %1701 = vmatmul.mubr.bf16.gmra.mrb[0].mxu0 %v1064
    %v1702 = vpop.f32.mrb[0].mxu0
    %v1703 = vadd.f32 %v1418, %v1702
    %v1704 = vpop.f32.mrb[0].mxu0
    %v1705 = vpop.f32.mrb[0].mxu0
    %v1706 = vadd.f32 %v1418, %v1705
    %v1707 = vpop.f32.mrb[0].mxu0
    %1708 = vmatprep.mubr.bf16.mxu0 %v1102
    %1709 = vmatmul.mubr.bf16.gmra.mrb[0].mxu0 %v1065
    %v1710 = vpop.f32.mrb[0].mxu0
    %v1711 = vadd.f32 %v1418, %v1710
    %v1712 = vpop.f32.mrb[0].mxu0
    %v1713 = vpop.f32.mrb[0].mxu0
    %v1714 = vadd.f32 %v1418, %v1713
    %v1715 = vpop.f32.mrb[0].mxu0
    %1716 = vmatprep.mubr.bf16.mxu0 %v1110
    %1717 = vmatmul.mubr.bf16.gmra.mrb[0].mxu0 %v1066
    %v1718 = vpop.f32.mrb[0].mxu0
    %v1719 = vadd.f32 %v1418, %v1718
    %v1720 = vpop.f32.mrb[0].mxu0
    %v1721 = vpop.f32.mrb[0].mxu0
    %v1722 = vadd.f32 %v1418, %v1721
    %v1723 = vpop.f32.mrb[0].mxu0
    %1724 = vmatprep.mubr.bf16.mxu0 %v1236
    %1725 = vmatmul.mubr.bf16.gmra.mrb[0].mxu0 %v1214
    %v1726 = vpop.f32.mrb[0].mxu0
    %v1727 = vadd.f32 %v1418, %v1726
    %v1728 = vpop.f32.mrb[0].mxu0
    %v1729 = vpop.f32.mrb[0].mxu0
    %v1730 = vadd.f32 %v1418, %v1729
    %v1731 = vpop.f32.mrb[0].mxu0
    %1732 = vmatprep.mubr.bf16.mxu0 %v1244
    %1733 = vmatmul.mubr.bf16.gmra.mrb[0].mxu0 %v1215
    %v1734 = vpop.f32.mrb[0].mxu0
    %v1735 = vadd.f32 %v1418, %v1734
    %v1736 = vpop.f32.mrb[0].mxu0
    %v1737 = vpop.f32.mrb[0].mxu0
    %v1738 = vadd.f32 %v1418, %v1737
    %v1739 = vpop.f32.mrb[0].mxu0
    %1740 = vmatprep.mubr.bf16.mxu0 %v1252
    %1741 = vmatmul.mubr.bf16.gmra.mrb[0].mxu0 %v1216
    %v1742 = vpop.f32.mrb[0].mxu0
    %v1743 = vadd.f32 %v1418, %v1742
    %v1744 = vpop.f32.mrb[0].mxu0
    %v1745 = vpop.f32.mrb[0].mxu0
    %v1746 = vadd.f32 %v1418, %v1745
    %v1747 = vpop.f32.mrb[0].mxu0
    %1748 = vmatprep.mubr.bf16.mxu0 %v1260
    %1749 = vmatmul.mubr.bf16.gmra.mrb[0].mxu0 %v1217
    %v1750 = vpop.f32.mrb[0].mxu0
    %v1751 = vadd.f32 %v1418, %v1750
    %v1752 = vpop.f32.mrb[0].mxu0
    %v1753 = vpop.f32.mrb[0].mxu0
    %v1754 = vadd.f32 %v1418, %v1753
    %v1755 = vpop.f32.mrb[0].mxu0
    %1756 = vdwg.mxu0
    %1757 = vmatprep.subr.bf16.mxu0 0
    %1758 = vmatpush1.bf16.msra.mxu0 %v1596
    %1759 = vmatprep.subr.bf16.mxu0 0
    %1760 = vmatpush1.bf16.msra.mxu0 %v1597
    %1761 = vmatprep.subr.bf16.mxu0 0
    %1762 = vmatpush1.bf16.msra.mxu0 %v1598
    %1763 = vmatprep.subr.bf16.mxu0 0
    %1764 = vmatpush1.bf16.msra.mxu0 %v1599
    %1765 = vmatprep.subr.bf16.mxu0 0
    %1766 = vmatpush1.bf16.msra.mxu0 %v1600
    %1767 = vmatprep.subr.bf16.mxu0 0
    %1768 = vmatpush1.bf16.msra.mxu0 %v1601
    %1769 = vmatprep.subr.bf16.mxu0 0
    %1770 = vmatpush1.bf16.msra.mxu0 %v1602
    %1771 = vmatprep.subr.bf16.mxu0 0
    %1772 = vmatpush1.bf16.msra.mxu0 %v1603
    %1773 = vmatprep.subr.bf16.mxu0 0
    %1774 = vmatpush1.bf16.msra.mxu0 %v1604
    %1775 = vmatprep.subr.bf16.mxu0 0
    %1776 = vmatpush1.bf16.msra.mxu0 %v1605
    %1777 = vmatprep.subr.bf16.mxu0 0
    %1778 = vmatpush1.bf16.msra.mxu0 %v1606
    %1779 = vmatprep.subr.bf16.mxu0 0
    %1780 = vmatpush1.bf16.msra.mxu0 %v1607
    %1781 = vmatprep.subr.bf16.mxu0 0
    %1782 = vmatpush1.bf16.msra.mxu0 %v1608
    %1783 = vmatprep.subr.bf16.mxu0 0
    %1784 = vmatpush1.bf16.msra.mxu0 %v1609
    %1785 = vmatprep.subr.bf16.mxu0 0
    %1786 = vmatpush1.bf16.msra.mxu0 %v1610
    %1787 = vmatprep.subr.bf16.mxu0 0
    %1788 = vmatpush1.bf16.msra.mxu0 %v1611
    %1789 = vmatprep.mubr.bf16.mxu0 %v1147
    %1790 = vmatmul.mubr.bf16.gmra.mrb[0].mxu0 %v1121
    %v1791 = vpop.f32.mrb[0].mxu0
    %v1792 = vadd.f32 %v1695, %v1791
    %v1793 = vpop.f32.mrb[0].mxu0
    %v1794 = vpop.f32.mrb[0].mxu0
    %v1795 = vadd.f32 %v1698, %v1794
    %v1796 = vpop.f32.mrb[0].mxu0
    %1797 = vmatprep.mubr.bf16.mxu0 %v1151
    %1798 = vmatmul.mubr.bf16.gmra.mrb[0].mxu0 %v1123
    %v1799 = vpop.f32.mrb[0].mxu0
    %v1800 = vadd.f32 %v1703, %v1799
    %v1801 = vpop.f32.mrb[0].mxu0
    %v1802 = vpop.f32.mrb[0].mxu0
    %v1803 = vadd.f32 %v1706, %v1802
    %v1804 = vpop.f32.mrb[0].mxu0
    %1805 = vmatprep.mubr.bf16.mxu0 %v1155
    %1806 = vmatmul.mubr.bf16.gmra.mrb[0].mxu0 %v1125
    %v1807 = vpop.f32.mrb[0].mxu0
    %v1808 = vadd.f32 %v1711, %v1807
    %v1809 = vpop.f32.mrb[0].mxu0
    %v1810 = vpop.f32.mrb[0].mxu0
    %v1811 = vadd.f32 %v1714, %v1810
    %v1812 = vpop.f32.mrb[0].mxu0
    %1813 = vmatprep.mubr.bf16.mxu0 %v1164
    %1814 = vmatmul.mubr.bf16.gmra.mrb[0].mxu0 %v1127
    %v1815 = vpop.f32.mrb[0].mxu0
    %v1816 = vadd.f32 %v1719, %v1815
    %v1817 = vpop.f32.mrb[0].mxu0
    %v1818 = vpop.f32.mrb[0].mxu0
    %v1819 = vadd.f32 %v1722, %v1818
    %v1820 = vpop.f32.mrb[0].mxu0
    %1821 = vmatprep.mubr.bf16.mxu0 %v1295
    %1822 = vmatmul.mubr.bf16.gmra.mrb[0].mxu0 %v1270
    %v1823 = vpop.f32.mrb[0].mxu0
    %v1824 = vadd.f32 %v1727, %v1823
    %v1825 = vpop.f32.mrb[0].mxu0
    %v1826 = vpop.f32.mrb[0].mxu0
    %v1827 = vadd.f32 %v1730, %v1826
    %v1828 = vpop.f32.mrb[0].mxu0
    %1829 = vmatprep.mubr.bf16.mxu0 %v1299
    %1830 = vmatmul.mubr.bf16.gmra.mrb[0].mxu0 %v1272
    %v1831 = vpop.f32.mrb[0].mxu0
    %v1832 = vadd.f32 %v1735, %v1831
    %v1833 = vpop.f32.mrb[0].mxu0
    %v1834 = vpop.f32.mrb[0].mxu0
    %v1835 = vadd.f32 %v1738, %v1834
    %v1836 = vpop.f32.mrb[0].mxu0
    %1837 = vmatprep.mubr.bf16.mxu0 %v1303
    %1838 = vmatmul.mubr.bf16.gmra.mrb[0].mxu0 %v1274
    %v1839 = vpop.f32.mrb[0].mxu0
    %v1840 = vadd.f32 %v1743, %v1839
    %v1841 = vpop.f32.mrb[0].mxu0
    %v1842 = vpop.f32.mrb[0].mxu0
    %v1843 = vadd.f32 %v1746, %v1842
    %v1844 = vpop.f32.mrb[0].mxu0
    %1845 = vmatprep.mubr.bf16.mxu0 %v1312
    %1846 = vmatmul.mubr.bf16.gmra.mrb[0].mxu0 %v1276
    %v1847 = vpop.f32.mrb[0].mxu0
    %v1848 = vadd.f32 %v1751, %v1847
    %v1849 = vpop.f32.mrb[0].mxu0
    %v1850 = vpop.f32.mrb[0].mxu0
    %v1851 = vadd.f32 %v1754, %v1850
    %v1852 = vpop.f32.mrb[0].mxu0
    %1853 = vdwg.mxu0
    %1854 = vmatprep.subr.bf16.mxu0 0
    %1855 = vmatpush1.bf16.msra.mxu0 %v1612
    %1856 = vmatprep.subr.bf16.mxu0 0
    %1857 = vmatpush1.bf16.msra.mxu0 %v1613
    %1858 = vmatprep.subr.bf16.mxu0 0
    %1859 = vmatpush1.bf16.msra.mxu0 %v1614
    %1860 = vmatprep.subr.bf16.mxu0 0
    %1861 = vmatpush1.bf16.msra.mxu0 %v1615
    %1862 = vmatprep.subr.bf16.mxu0 0
    %1863 = vmatpush1.bf16.msra.mxu0 %v1616
    %1864 = vmatprep.subr.bf16.mxu0 0
    %1865 = vmatpush1.bf16.msra.mxu0 %v1617
    %1866 = vmatprep.subr.bf16.mxu0 0
    %1867 = vmatpush1.bf16.msra.mxu0 %v1618
    %1868 = vmatprep.subr.bf16.mxu0 0
    %1869 = vmatpush1.bf16.msra.mxu0 %v1619
    %1870 = vmatprep.subr.bf16.mxu0 0
    %1871 = vmatpush1.bf16.msra.mxu0 0
    %1872 = vmatprep.subr.bf16.mxu0 0
    %1873 = vmatpush1.bf16.msra.mxu0 0
    %1874 = vmatprep.subr.bf16.mxu0 0
    %1875 = vmatpush1.bf16.msra.mxu0 0
    %1876 = vmatprep.subr.bf16.mxu0 0
    %1877 = vmatpush1.bf16.msra.mxu0 0
    %1878 = vmatprep.subr.bf16.mxu0 0
    %1879 = vmatpush1.bf16.msra.mxu0 0
    %1880 = vmatprep.subr.bf16.mxu0 0
    %1881 = vmatpush1.bf16.msra.mxu0 0
    %1882 = vmatprep.subr.bf16.mxu0 0
    %1883 = vmatpush1.bf16.msra.mxu0 0
    %1884 = vmatprep.subr.bf16.mxu0 0
    %1885 = vmatpush1.bf16.msra.mxu0 0
    %1886 = vmatprep.mubr.bf16.mxu0 0
    %1887 = vmatmul.mubr.bf16.gmra.mrb[0].mxu0 %v1175
    %v1888 = vpop.f32.mrb[0].mxu0
    %v1889 = vadd.f32 %v1792, %v1888
    %v1890 = vpop.f32.mrb[0].mxu0
    %v1891 = vpop.f32.mrb[0].mxu0
    %v1892 = vadd.f32 %v1795, %v1891
    %v1893 = vpop.f32.mrb[0].mxu0
    %1894 = vmatprep.mubr.bf16.mxu0 0
    %1895 = vmatmul.mubr.bf16.gmra.mrb[0].mxu0 %v1177
    %v1896 = vpop.f32.mrb[0].mxu0
    %v1897 = vadd.f32 %v1800, %v1896
    %v1898 = vpop.f32.mrb[0].mxu0
    %v1899 = vpop.f32.mrb[0].mxu0
    %v1900 = vadd.f32 %v1803, %v1899
    %v1901 = vpop.f32.mrb[0].mxu0
    %1902 = vmatprep.mubr.bf16.mxu0 0
    %1903 = vmatmul.mubr.bf16.gmra.mrb[0].mxu0 %v1179
    %v1904 = vpop.f32.mrb[0].mxu0
    %v1905 = vadd.f32 %v1808, %v1904
    %v1906 = vpop.f32.mrb[0].mxu0
    %v1907 = vpop.f32.mrb[0].mxu0
    %v1908 = vadd.f32 %v1811, %v1907
    %v1909 = vpop.f32.mrb[0].mxu0
    %1910 = vmatprep.mubr.bf16.mxu0 0
    %1911 = vmatmul.mubr.bf16.gmra.mrb[0].mxu0 %v1181
    %v1912 = vpop.f32.mrb[0].mxu0
    %v1913 = vadd.f32 %v1816, %v1912
    %v1914 = vpop.f32.mrb[0].mxu0
    %v1915 = vpop.f32.mrb[0].mxu0
    %v1916 = vadd.f32 %v1819, %v1915
    %v1917 = vpop.f32.mrb[0].mxu0
    %1918 = vmatprep.mubr.bf16.mxu0 0
    %1919 = vmatmul.mubr.bf16.gmra.mrb[0].mxu0 %v1322
    %v1920 = vpop.f32.mrb[0].mxu0
    %v1921 = vadd.f32 %v1824, %v1920
    %v1922 = vpop.f32.mrb[0].mxu0
    %v1923 = vpop.f32.mrb[0].mxu0
    %v1924 = vadd.f32 %v1827, %v1923
    %v1925 = vpop.f32.mrb[0].mxu0
    %1926 = vmatprep.mubr.bf16.mxu0 0
    %1927 = vmatmul.mubr.bf16.gmra.mrb[0].mxu0 %v1324
    %v1928 = vpop.f32.mrb[0].mxu0
    %v1929 = vadd.f32 %v1832, %v1928
    %v1930 = vpop.f32.mrb[0].mxu0
    %v1931 = vpop.f32.mrb[0].mxu0
    %v1932 = vadd.f32 %v1835, %v1931
    %v1933 = vpop.f32.mrb[0].mxu0
    %1934 = vmatprep.mubr.bf16.mxu0 0
    %1935 = vmatmul.mubr.bf16.gmra.mrb[0].mxu0 %v1326
    %v1936 = vpop.f32.mrb[0].mxu0
    %v1937 = vadd.f32 %v1840, %v1936
    %v1938 = vpop.f32.mrb[0].mxu0
    %v1939 = vpop.f32.mrb[0].mxu0
    %v1940 = vadd.f32 %v1843, %v1939
    %v1941 = vpop.f32.mrb[0].mxu0
    %1942 = vmatprep.mubr.bf16.mxu0 0
    %1943 = vmatmul.mubr.bf16.gmra.mrb[0].mxu0 %v1328
    %v1944 = vpop.f32.mrb[0].mxu0
    %v1945 = vadd.f32 %v1848, %v1944
    %v1946 = vpop.f32.mrb[0].mxu0
    %v1947 = vpop.f32.mrb[0].mxu0
    %v1948 = vadd.f32 %v1851, %v1947
    %v1949 = vpop.f32.mrb[0].mxu0
    %1950 = vdwg.mxu0
    %v1951 = vmax.f32 %v1889, 0.0
    %v1952 = vmax.f32 %v1892, 0.0
    %v1953 = vmax.f32 %v1897, 0.0
    %v1954 = vmax.f32 %v1900, 0.0
    %v1955 = vmax.f32 %v1905, 0.0
    %v1956 = vmax.f32 %v1908, 0.0
    %v1957 = vmax.f32 %v1913, 0.0
    %v1958 = vmax.f32 %v1916, 0.0
    %v1959 = vmax.f32 %v1921, 0.0
    %v1960 = vmax.f32 %v1924, 0.0
    %v1961 = vmax.f32 %v1929, 0.0
    %v1962 = vmax.f32 %v1932, 0.0
    %v1963 = vmax.f32 %v1937, 0.0
    %v1964 = vmax.f32 %v1940, 0.0
    %v1965 = vmax.f32 %v1945, 0.0
    %v1966 = vmax.f32 %v1948, 0.0
    %v1967 = vpack.c.bf16 %v1952, %v1951
    %v1968 = vpack.c.bf16 %v1954, %v1953
    %v1969 = vpack.c.bf16 %v1956, %v1955
    %v1970 = vpack.c.bf16 %v1958, %v1957
    %v1971 = vpack.c.bf16 %v1960, %v1959
    %v1972 = vpack.c.bf16 %v1962, %v1961
    %v1973 = vpack.c.bf16 %v1964, %v1963
    %v1974 = vpack.c.bf16 %v1966, %v1965
    %1975 = vst [vmem:[#allocation3] sm:$0xf] 0
    %1976 = vst [vmem:[#allocation3 + $0x4] sm:$0xf] 0
    %1977 = vst [vmem:[#allocation3 + $0x8] sm:$0xf] 0
    %1978 = vst [vmem:[#allocation3 + $0xc] sm:$0xf] 0
    %1979 = vst [vmem:[#allocation3 + $0x10] sm:$0xf] 0
    %1980 = vst [vmem:[#allocation3 + $0x14] sm:$0xf] 0
    %1981 = vst [vmem:[#allocation3 + $0x18] sm:$0xf] 0
    %1982 = vst [vmem:[#allocation3 + $0x1c] sm:$0xf] 0
    %1983 = vst [vmem:[#allocation3 + $0x20] sm:$0x1] 0
    %1984 = vst [vmem:[#allocation3 + $0x24] sm:$0xf] 0
    %1985 = vst [vmem:[#allocation3 + $0x28] sm:$0xf] 0
    %1986 = vst [vmem:[#allocation3 + $0x2c] sm:$0xf] 0
    %1987 = vst [vmem:[#allocation3 + $0x30] sm:$0xf] 0
    %1988 = vst [vmem:[#allocation3 + $0x34] sm:$0xf] 0
    %1989 = vst [vmem:[#allocation3 + $0x38] sm:$0xf] 0
    %1990 = vst [vmem:[#allocation3 + $0x3c] sm:$0xf] 0
    %1991 = vst [vmem:[#allocation3 + $0x40] sm:$0xf] 0
    %1992 = vst [vmem:[#allocation3 + $0x44] sm:$0x1] 0
    %v1997 = vunpack.c.l.b16 %v1967
    %v1998 = vunpack.c.h.b16 %v1967
    %v1999 = vunpack.c.l.b16 %v1968
    %v2000 = vunpack.c.h.b16 %v1968
    %v2001 = vunpack.c.l.b16 %v1969
    %v2002 = vunpack.c.h.b16 %v1969
    %v2003 = vunpack.c.l.b16 %v1970
    %v2004 = vunpack.c.h.b16 %v1970
    %v2005 = vpack.c.b16 %v1997, %v1997
    %v2006 = vpack.c.b16 %v1998, %v1998
    %v2007 = vpack.c.b16 %v1999, %v1999
    %v2008 = vpack.c.b16 %v2000, %v2000
    %v2009 = vpack.c.b16 %v2001, %v2001
    %v2010 = vpack.c.b16 %v2002, %v2002
    %v2011 = vpack.c.b16 %v2003, %v2003
    %v2012 = vpack.c.b16 %v2004, %v2004
    %vm2013 = vsmask.f32 256
    %vm2014 = vsmask.f32 4368
    %vm2015 = vmor %vm2013, %vm2014
    %v2017 = vshrl.u32 %v2005, 16
    %v2019 = vrot.slane %v2017, 7
    %v2020 = vshll.u32 %v2005, 16
    %v2022 = vor.u32 %v2019, %v2020
    %v2023 = vrot.slane %v2019, 4
    %v2025 = vshrl.u32 %v2006, 16
    %v2027 = vrot.slane %v2025, 7
    %v2028 = vshll.u32 %v2006, 16
    %v2030 = vor.u32 %v2027, %v2028
    %v2031 = vsel %vm2015, %v2023, %v2030
    %v2032 = vrot.slane %v2027, 4
    %v2034 = vshrl.u32 %v2007, 16
    %v2036 = vrot.slane %v2034, 7
    %v2037 = vshll.u32 %v2007, 16
    %v2039 = vor.u32 %v2036, %v2037
    %v2040 = vsel %vm2015, %v2032, %v2039
    %v2041 = vrot.slane %v2036, 4
    %v2043 = vshrl.u32 %v2008, 16
    %v2045 = vrot.slane %v2043, 7
    %v2046 = vshll.u32 %v2008, 16
    %v2048 = vor.u32 %v2045, %v2046
    %v2049 = vsel %vm2015, %v2041, %v2048
    %v2050 = vrot.slane %v2045, 4
    %v2052 = vshrl.u32 %v2009, 16
    %v2054 = vrot.slane %v2052, 7
    %v2055 = vshll.u32 %v2009, 16
    %v2057 = vor.u32 %v2054, %v2055
    %v2058 = vsel %vm2015, %v2050, %v2057
    %v2059 = vrot.slane %v2054, 4
    %v2061 = vshrl.u32 %v2010, 16
    %v2063 = vrot.slane %v2061, 7
    %v2064 = vshll.u32 %v2010, 16
    %v2066 = vor.u32 %v2063, %v2064
    %v2067 = vsel %vm2015, %v2059, %v2066
    %v2068 = vrot.slane %v2063, 4
    %v2070 = vshrl.u32 %v2011, 16
    %v2072 = vrot.slane %v2070, 7
    %v2073 = vshll.u32 %v2011, 16
    %v2075 = vor.u32 %v2072, %v2073
    %v2076 = vsel %vm2015, %v2068, %v2075
    %v2077 = vrot.slane %v2072, 4
    %v2079 = vshrl.u32 %v2012, 16
    %v2081 = vrot.slane %v2079, 7
    %v2082 = vshll.u32 %v2012, 16
    %v2084 = vor.u32 %v2081, %v2082
    %v2085 = vsel %vm2015, %v2077, %v2084
    %v2086 = vrot.slane %v2081, 4
    %vm2096 = vcmask 1043456
    %vm2097 = vsmask.f32 7938
    %vm2098 = vmand %vm2096, %vm2097
    %v2099 = vld [vmem:[#allocation3] sm:$0xf]
    %v2100 = vsel %vm2098, %v2022, %v2099
    %2101 = vst [vmem:[#allocation3] sm:$0xf] %v2100
    %2102 = vst [vmem:[#allocation3 + $0x4] sm:$0xf] %v2031
    %2103 = vst [vmem:[#allocation3 + $0x8] sm:$0xf] %v2040
    %2104 = vst [vmem:[#allocation3 + $0xc] sm:$0xf] %v2049
    %2105 = vst [vmem:[#allocation3 + $0x10] sm:$0xf] %v2058
    %2106 = vst [vmem:[#allocation3 + $0x14] sm:$0xf] %v2067
    %2107 = vst [vmem:[#allocation3 + $0x18] sm:$0xf] %v2076
    %2108 = vst [vmem:[#allocation3 + $0x1c] sm:$0xf] %v2085
    %vm2109 = vmand %vm532, %vm2013
    %v2110 = vld [vmem:[#allocation3 + $0x20] sm:$0x1]
    %v2111 = vsel %vm2109, %v2086, %v2110
    %2112 = vst [vmem:[#allocation3 + $0x20] sm:$0x1] %v2111
    %v2117 = vunpack.c.l.b16 %v1971
    %v2118 = vunpack.c.h.b16 %v1971
    %v2119 = vunpack.c.l.b16 %v1972
    %v2120 = vunpack.c.h.b16 %v1972
    %v2121 = vunpack.c.l.b16 %v1973
    %v2122 = vunpack.c.h.b16 %v1973
    %v2123 = vunpack.c.l.b16 %v1974
    %v2124 = vunpack.c.h.b16 %v1974
    %v2125 = vpack.c.b16 %v2117, %v2117
    %v2126 = vpack.c.b16 %v2118, %v2118
    %v2127 = vpack.c.b16 %v2119, %v2119
    %v2128 = vpack.c.b16 %v2120, %v2120
    %v2129 = vpack.c.b16 %v2121, %v2121
    %v2130 = vpack.c.b16 %v2122, %v2122
    %v2131 = vpack.c.b16 %v2123, %v2123
    %v2132 = vpack.c.b16 %v2124, %v2124
    %v2134 = vshrl.u32 %v2125, 16
    %v2136 = vrot.slane %v2134, 7
    %v2137 = vshll.u32 %v2125, 16
    %v2139 = vor.u32 %v2136, %v2137
    %v2140 = vrot.slane %v2136, 4
    %v2142 = vshrl.u32 %v2126, 16
    %v2144 = vrot.slane %v2142, 7
    %v2145 = vshll.u32 %v2126, 16
    %v2147 = vor.u32 %v2144, %v2145
    %v2148 = vsel %vm2015, %v2140, %v2147
    %v2149 = vrot.slane %v2144, 4
    %v2151 = vshrl.u32 %v2127, 16
    %v2153 = vrot.slane %v2151, 7
    %v2154 = vshll.u32 %v2127, 16
    %v2156 = vor.u32 %v2153, %v2154
    %v2157 = vsel %vm2015, %v2149, %v2156
    %v2158 = vrot.slane %v2153, 4
    %v2160 = vshrl.u32 %v2128, 16
    %v2162 = vrot.slane %v2160, 7
    %v2163 = vshll.u32 %v2128, 16
    %v2165 = vor.u32 %v2162, %v2163
    %v2166 = vsel %vm2015, %v2158, %v2165
    %v2167 = vrot.slane %v2162, 4
    %v2169 = vshrl.u32 %v2129, 16
    %v2171 = vrot.slane %v2169, 7
    %v2172 = vshll.u32 %v2129, 16
    %v2174 = vor.u32 %v2171, %v2172
    %v2175 = vsel %vm2015, %v2167, %v2174
    %v2176 = vrot.slane %v2171, 4
    %v2178 = vshrl.u32 %v2130, 16
    %v2180 = vrot.slane %v2178, 7
    %v2181 = vshll.u32 %v2130, 16
    %v2183 = vor.u32 %v2180, %v2181
    %v2184 = vsel %vm2015, %v2176, %v2183
    %v2185 = vrot.slane %v2180, 4
    %v2187 = vshrl.u32 %v2131, 16
    %v2189 = vrot.slane %v2187, 7
    %v2190 = vshll.u32 %v2131, 16
    %v2192 = vor.u32 %v2189, %v2190
    %v2193 = vsel %vm2015, %v2185, %v2192
    %v2194 = vrot.slane %v2189, 4
    %v2196 = vshrl.u32 %v2132, 16
    %v2198 = vrot.slane %v2196, 7
    %v2199 = vshll.u32 %v2132, 16
    %v2201 = vor.u32 %v2198, %v2199
    %v2202 = vsel %vm2015, %v2194, %v2201
    %v2203 = vrot.slane %v2198, 4
    %s2213 = scalar_lea.vmem [#allocation3], 36
    %v2214 = vld [vmem:[%s2213] sm:$0xf]
    %v2215 = vsel %vm2098, %v2139, %v2214
    %2216 = vst [vmem:[%s2213] sm:$0xf] %v2215
    %2217 = vst [vmem:[%s2213 + $0x4] sm:$0xf] %v2148
    %2218 = vst [vmem:[%s2213 + $0x8] sm:$0xf] %v2157
    %2219 = vst [vmem:[%s2213 + $0xc] sm:$0xf] %v2166
    %2220 = vst [vmem:[%s2213 + $0x10] sm:$0xf] %v2175
    %2221 = vst [vmem:[%s2213 + $0x14] sm:$0xf] %v2184
    %2222 = vst [vmem:[%s2213 + $0x18] sm:$0xf] %v2193
    %2223 = vst [vmem:[%s2213 + $0x1c] sm:$0xf] %v2202
    %v2224 = vld [vmem:[%s2213 + $0x20] sm:$0x1]
    %v2225 = vsel %vm2109, %v2203, %v2224
    %2226 = vst [vmem:[%s2213 + $0x20] sm:$0x1] %v2225
    %v2227 = vld [vmem:[#allocation3] sm:$0xf]
    %v2228 = vld [vmem:[#allocation3 + $0x4] sm:$0xf]
    %v2229 = vld [vmem:[#allocation3 + $0x8] sm:$0xf]
    %v2230 = vld [vmem:[#allocation3 + $0xc] sm:$0xf]
    %v2231 = vld [vmem:[#allocation3 + $0x10] sm:$0xf]
    %v2232 = vld [vmem:[#allocation3 + $0x14] sm:$0xf]
    %v2233 = vld [vmem:[#allocation3 + $0x18] sm:$0xf]
    %v2234 = vld [vmem:[#allocation3 + $0x1c] sm:$0xf]
    %v2235 = vld [vmem:[#allocation3 + $0x20] sm:$0x1]
    %v2236 = vld [vmem:[#allocation3] sm:$0xe]
    %v2245 = vunpack.c.l.b16 %v2227
    %v2246 = vunpack.c.l.b16 %v2228
    %v2247 = vunpack.c.l.b16 %v2229
    %v2248 = vunpack.c.l.b16 %v2230
    %v2249 = vunpack.c.l.b16 %v2231
    %v2250 = vunpack.c.l.b16 %v2232
    %v2251 = vunpack.c.l.b16 %v2233
    %v2252 = vunpack.c.l.b16 %v2234
    %v2253 = vpack.c.b16 %v2246, %v2245
    %v2254 = vpack.c.b16 %v2248, %v2247
    %v2255 = vpack.c.b16 %v2250, %v2249
    %v2256 = vpack.c.b16 %v2252, %v2251
    %v2262 = vunpack.c.l.b16 %v2235
    %v2263 = vpack.c.b16 %v2262, %v2262
    %v2265 = vshrl.u32 %v2253, 16
    %v2267 = vshll.u32 %v2253, 16
    %v2269 = vrot.slane %v2267, 1
    %v2270 = vor.u32 %v2265, %v2269
    %v2272 = vshll.u32 %v2254, 16
    %v2274 = vrot.slane %v2272, 1
    %v2275 = vsel %vm1074, %v2270, %v2274
    %v2276 = vshrl.u32 %v2254, 16
    %v2278 = vor.u32 %v2276, %v2274
    %v2280 = vshll.u32 %v2255, 16
    %v2282 = vrot.slane %v2280, 1
    %v2283 = vsel %vm1074, %v2278, %v2282
    %v2284 = vshrl.u32 %v2255, 16
    %v2286 = vor.u32 %v2284, %v2282
    %v2288 = vshll.u32 %v2256, 16
    %v2290 = vrot.slane %v2288, 1
    %v2291 = vsel %vm1074, %v2286, %v2290
    %v2292 = vshrl.u32 %v2256, 16
    %v2294 = vor.u32 %v2292, %v2290
    %v2296 = vshll.u32 %v2263, 16
    %v2298 = vrot.slane %v2296, 1
    %v2299 = vsel %vm1074, %v2294, %v2298
    %v2305 = vunpack.c.l.b16 %v2236
    %v2306 = vpack.c.b16 %v2246, %v2305
    %v2307 = vrot.slane %v2306, 1
    %v2308 = vrot.slane %v2254, 1
    %v2309 = vsel %vm1118, %v2307, %v2308
    %v2310 = vrot.slane %v2255, 1
    %v2311 = vsel %vm1118, %v2308, %v2310
    %v2312 = vrot.slane %v2256, 1
    %v2313 = vsel %vm1118, %v2310, %v2312
    %v2314 = vrot.slane %v2263, 1
    %v2315 = vsel %vm1118, %v2312, %v2314
    %v2320 = vld [vmem:[%s2213] sm:$0xf]
    %v2321 = vld [vmem:[%s2213 + $0x4] sm:$0xf]
    %v2322 = vld [vmem:[%s2213 + $0x8] sm:$0xf]
    %v2323 = vld [vmem:[%s2213 + $0xc] sm:$0xf]
    %v2324 = vld [vmem:[%s2213 + $0x10] sm:$0xf]
    %v2325 = vld [vmem:[%s2213 + $0x14] sm:$0xf]
    %v2326 = vld [vmem:[%s2213 + $0x18] sm:$0xf]
    %v2327 = vld [vmem:[%s2213 + $0x1c] sm:$0xf]
    %v2328 = vld [vmem:[%s2213 + $0x20] sm:$0x1]
    %v2329 = vld [vmem:[%s2213] sm:$0xe]
    %v2338 = vunpack.c.l.b16 %v2320
    %v2339 = vunpack.c.l.b16 %v2321
    %v2340 = vunpack.c.l.b16 %v2322
    %v2341 = vunpack.c.l.b16 %v2323
    %v2342 = vunpack.c.l.b16 %v2324
    %v2343 = vunpack.c.l.b16 %v2325
    %v2344 = vunpack.c.l.b16 %v2326
    %v2345 = vunpack.c.l.b16 %v2327
    %v2346 = vpack.c.b16 %v2339, %v2338
    %v2347 = vpack.c.b16 %v2341, %v2340
    %v2348 = vpack.c.b16 %v2343, %v2342
    %v2349 = vpack.c.b16 %v2345, %v2344
    %v2355 = vunpack.c.l.b16 %v2328
    %v2356 = vpack.c.b16 %v2355, %v2355
    %v2358 = vshrl.u32 %v2346, 16
    %v2360 = vshll.u32 %v2346, 16
    %v2362 = vrot.slane %v2360, 1
    %v2363 = vor.u32 %v2358, %v2362
    %v2365 = vshll.u32 %v2347, 16
    %v2367 = vrot.slane %v2365, 1
    %v2368 = vsel %vm1074, %v2363, %v2367
    %v2369 = vshrl.u32 %v2347, 16
    %v2371 = vor.u32 %v2369, %v2367
    %v2373 = vshll.u32 %v2348, 16
    %v2375 = vrot.slane %v2373, 1
    %v2376 = vsel %vm1074, %v2371, %v2375
    %v2377 = vshrl.u32 %v2348, 16
    %v2379 = vor.u32 %v2377, %v2375
    %v2381 = vshll.u32 %v2349, 16
    %v2383 = vrot.slane %v2381, 1
    %v2384 = vsel %vm1074, %v2379, %v2383
    %v2385 = vshrl.u32 %v2349, 16
    %v2387 = vor.u32 %v2385, %v2383
    %v2389 = vshll.u32 %v2356, 16
    %v2391 = vrot.slane %v2389, 1
    %v2392 = vsel %vm1074, %v2387, %v2391
    %v2398 = vunpack.c.l.b16 %v2329
    %v2399 = vpack.c.b16 %v2339, %v2398
    %v2400 = vrot.slane %v2399, 1
    %v2401 = vrot.slane %v2347, 1
    %v2402 = vsel %vm1118, %v2400, %v2401
    %v2403 = vrot.slane %v2348, 1
    %v2404 = vsel %vm1118, %v2401, %v2403
    %v2405 = vrot.slane %v2349, 1
    %v2406 = vsel %vm1118, %v2403, %v2405
    %v2407 = vrot.slane %v2356, 1
    %v2408 = vsel %vm1118, %v2405, %v2407
    %v2413 = vld [vmem:[#allocation7] sm:$0xf]
    %v2414 = vld [vmem:[#allocation7 + $0x4] sm:$0xf]
    %v2415 = vld [vmem:[#allocation7 + $0x8] sm:$0xf]
    %v2416 = vld [vmem:[#allocation7 + $0xc] sm:$0xf]
    %v2417 = vld [vmem:[#allocation7 + $0x10] sm:$0xf]
    %v2418 = vld [vmem:[#allocation7 + $0x14] sm:$0xf]
    %v2419 = vld [vmem:[#allocation7 + $0x18] sm:$0xf]
    %v2420 = vld [vmem:[#allocation7 + $0x1c] sm:$0xf]
    %v2421 = vld [vmem:[#allocation7 + $0x20] sm:$0xf]
    %v2422 = vld [vmem:[#allocation7 + $0x24] sm:$0xf]
    %v2423 = vld [vmem:[#allocation7 + $0x28] sm:$0xf]
    %v2424 = vld [vmem:[#allocation7 + $0x2c] sm:$0xf]
    %v2425 = vld [vmem:[#allocation7 + $0x30] sm:$0xf]
    %v2426 = vld [vmem:[#allocation7 + $0x34] sm:$0xf]
    %v2427 = vld [vmem:[#allocation7 + $0x38] sm:$0xf]
    %v2428 = vld [vmem:[#allocation7 + $0x3c] sm:$0xf]
    %v2429 = vld [vmem:[#allocation7 + $0x40] sm:$0xf]
    %v2430 = vld [vmem:[#allocation7 + $0x44] sm:$0xf]
    %v2431 = vld [vmem:[#allocation7 + $0x48] sm:$0xf]
    %v2432 = vld [vmem:[#allocation7 + $0x4c] sm:$0xf]
    %v2433 = vld [vmem:[#allocation7 + $0x50] sm:$0xf]
    %v2434 = vld [vmem:[#allocation7 + $0x54] sm:$0xf]
    %v2435 = vld [vmem:[#allocation7 + $0x58] sm:$0xf]
    %v2436 = vld [vmem:[#allocation7 + $0x5c] sm:$0xf]
    %v2437 = vld [vmem:[#allocation7 + $0x60] sm:$0xf]
    %v2438 = vld [vmem:[#allocation7 + $0x64] sm:$0xf]
    %v2439 = vld [vmem:[#allocation7 + $0x68] sm:$0xf]
    %v2440 = vld [vmem:[#allocation7 + $0x6c] sm:$0xf]
    %v2441 = vld [vmem:[#allocation7 + $0x70] sm:$0xf]
    %v2442 = vld [vmem:[#allocation7 + $0x74] sm:$0xf]
    %v2443 = vld [vmem:[#allocation7 + $0x78] sm:$0xf]
    %v2444 = vld [vmem:[#allocation7 + $0x7c] sm:$0xf]
    %v2445 = vld [vmem:[#allocation7 + $0x80] sm:$0xf]
    %v2446 = vld [vmem:[#allocation7 + $0x84] sm:$0xf]
    %v2447 = vld [vmem:[#allocation7 + $0x88] sm:$0xf]
    %v2448 = vld [vmem:[#allocation7 + $0x8c] sm:$0xf]
    %v2449 = vld [vmem:[#allocation7 + $0x90] sm:$0xf]
    %v2450 = vld [vmem:[#allocation7 + $0x94] sm:$0xf]
    %v2451 = vld [vmem:[#allocation7 + $0x98] sm:$0xf]
    %v2452 = vld [vmem:[#allocation7 + $0x9c] sm:$0xf]
    %v2453 = vld [vmem:[#allocation7 + $0xa0] sm:$0xf]
    %v2454 = vld [vmem:[#allocation7 + $0xa4] sm:$0xf]
    %v2455 = vld [vmem:[#allocation7 + $0xa8] sm:$0xf]
    %v2456 = vld [vmem:[#allocation7 + $0xac] sm:$0xf]
    %v2457 = vld [vmem:[#allocation7 + $0xb0] sm:$0xf]
    %v2458 = vld [vmem:[#allocation7 + $0xb4] sm:$0xf]
    %v2459 = vld [vmem:[#allocation7 + $0xb8] sm:$0xf]
    %v2460 = vld [vmem:[#allocation7 + $0xbc] sm:$0xf]
    %v2461 = vld [vmem:[%s6] sm:$0x1]
    %v2463 = vlaneseq
    %v2464 = vshrl.u32 %v2463, 7
    %v2465 = vsub.s32 0, %v2464
    %v2466 = vrot.slane %v2461, %v2465
    %v2516 = vunpack.c.l.b16 %v2413
    %v2517 = vunpack.c.l.b16 %v2414
    %v2518 = vunpack.c.l.b16 %v2415
    %v2519 = vunpack.c.l.b16 %v2416
    %v2520 = vunpack.c.l.b16 %v2417
    %v2521 = vunpack.c.l.b16 %v2418
    %v2522 = vunpack.c.l.b16 %v2419
    %v2523 = vunpack.c.l.b16 %v2420
    %v2524 = vunpack.c.l.b16 %v2421
    %v2525 = vunpack.c.l.b16 %v2422
    %v2526 = vunpack.c.l.b16 %v2423
    %v2527 = vunpack.c.l.b16 %v2424
    %v2528 = vunpack.c.l.b16 %v2425
    %v2529 = vunpack.c.l.b16 %v2426
    %v2530 = vunpack.c.l.b16 %v2427
    %v2531 = vunpack.c.l.b16 %v2428
    %v2532 = vunpack.c.l.b16 %v2429
    %v2533 = vunpack.c.l.b16 %v2430
    %v2534 = vunpack.c.l.b16 %v2431
    %v2535 = vunpack.c.l.b16 %v2432
    %v2536 = vunpack.c.l.b16 %v2433
    %v2537 = vunpack.c.l.b16 %v2434
    %v2538 = vunpack.c.l.b16 %v2435
    %v2539 = vunpack.c.l.b16 %v2436
    %v2540 = vunpack.c.l.b16 %v2437
    %v2541 = vunpack.c.l.b16 %v2438
    %v2542 = vunpack.c.l.b16 %v2439
    %v2543 = vunpack.c.l.b16 %v2440
    %v2544 = vunpack.c.l.b16 %v2441
    %v2545 = vunpack.c.l.b16 %v2442
    %v2546 = vunpack.c.l.b16 %v2443
    %v2547 = vunpack.c.l.b16 %v2444
    %v2548 = vunpack.c.l.b16 %v2445
    %v2549 = vunpack.c.l.b16 %v2446
    %v2550 = vunpack.c.l.b16 %v2447
    %v2551 = vunpack.c.l.b16 %v2448
    %v2552 = vunpack.c.l.b16 %v2449
    %v2553 = vunpack.c.l.b16 %v2450
    %v2554 = vunpack.c.l.b16 %v2451
    %v2555 = vunpack.c.l.b16 %v2452
    %v2556 = vunpack.c.l.b16 %v2453
    %v2557 = vunpack.c.l.b16 %v2454
    %v2558 = vunpack.c.l.b16 %v2455
    %v2559 = vunpack.c.l.b16 %v2456
    %v2560 = vunpack.c.l.b16 %v2457
    %v2561 = vunpack.c.l.b16 %v2458
    %v2562 = vunpack.c.l.b16 %v2459
    %v2563 = vunpack.c.l.b16 %v2460
    %v2564 = vpack.c.b16 %v2517, %v2516
    %v2565 = vpack.c.b16 %v2519, %v2518
    %v2566 = vpack.c.b16 %v2521, %v2520
    %v2567 = vpack.c.b16 %v2523, %v2522
    %v2568 = vpack.c.b16 %v2525, %v2524
    %v2569 = vpack.c.b16 %v2527, %v2526
    %v2570 = vpack.c.b16 %v2529, %v2528
    %v2571 = vpack.c.b16 %v2531, %v2530
    %v2572 = vpack.c.b16 %v2533, %v2532
    %v2573 = vpack.c.b16 %v2535, %v2534
    %v2574 = vpack.c.b16 %v2537, %v2536
    %v2575 = vpack.c.b16 %v2539, %v2538
    %v2576 = vpack.c.b16 %v2541, %v2540
    %v2577 = vpack.c.b16 %v2543, %v2542
    %v2578 = vpack.c.b16 %v2545, %v2544
    %v2579 = vpack.c.b16 %v2547, %v2546
    %v2580 = vpack.c.b16 %v2549, %v2548
    %v2581 = vpack.c.b16 %v2551, %v2550
    %v2582 = vpack.c.b16 %v2553, %v2552
    %v2583 = vpack.c.b16 %v2555, %v2554
    %v2584 = vpack.c.b16 %v2557, %v2556
    %v2585 = vpack.c.b16 %v2559, %v2558
    %v2586 = vpack.c.b16 %v2561, %v2560
    %v2587 = vpack.c.b16 %v2563, %v2562
    %2612 = vmatprep.subr.bf16.mxu0 0
    %2613 = vmatpush1.bf16.msra.mxu0 %v2564
    %2614 = vmatprep.subr.bf16.mxu0 0
    %2615 = vmatpush1.bf16.msra.mxu0 %v2565
    %2616 = vmatprep.subr.bf16.mxu0 0
    %2617 = vmatpush1.bf16.msra.mxu0 %v2566
    %2618 = vmatprep.subr.bf16.mxu0 0
    %2619 = vmatpush1.bf16.msra.mxu0 %v2567
    %2620 = vmatprep.subr.bf16.mxu0 0
    %2621 = vmatpush1.bf16.msra.mxu0 %v2568
    %2622 = vmatprep.subr.bf16.mxu0 0
    %2623 = vmatpush1.bf16.msra.mxu0 %v2569
    %2624 = vmatprep.subr.bf16.mxu0 0
    %2625 = vmatpush1.bf16.msra.mxu0 %v2570
    %2626 = vmatprep.subr.bf16.mxu0 0
    %2627 = vmatpush1.bf16.msra.mxu0 %v2571
    %2628 = vmatprep.subr.bf16.mxu0 0
    %2629 = vmatpush1.bf16.msra.mxu0 %v2572
    %2630 = vmatprep.subr.bf16.mxu0 0
    %2631 = vmatpush1.bf16.msra.mxu0 %v2573
    %2632 = vmatprep.subr.bf16.mxu0 0
    %2633 = vmatpush1.bf16.msra.mxu0 %v2574
    %2634 = vmatprep.subr.bf16.mxu0 0
    %2635 = vmatpush1.bf16.msra.mxu0 %v2575
    %2636 = vmatprep.subr.bf16.mxu0 0
    %2637 = vmatpush1.bf16.msra.mxu0 %v2576
    %2638 = vmatprep.subr.bf16.mxu0 0
    %2639 = vmatpush1.bf16.msra.mxu0 %v2577
    %2640 = vmatprep.subr.bf16.mxu0 0
    %2641 = vmatpush1.bf16.msra.mxu0 %v2578
    %2642 = vmatprep.subr.bf16.mxu0 0
    %2643 = vmatpush1.bf16.msra.mxu0 %v2579
    %2644 = vmatprep.mubr.bf16.mxu0 %v2275
    %2645 = vmatmul.mubr.bf16.gmra.mrb[0].mxu0 %v2253
    %v2646 = vpop.f32.mrb[0].mxu0
    %v2647 = vadd.f32 %v2466, %v2646
    %v2648 = vpop.f32.mrb[0].mxu0
    %v2649 = vpop.f32.mrb[0].mxu0
    %v2650 = vadd.f32 %v2466, %v2649
    %v2651 = vpop.f32.mrb[0].mxu0
    %2652 = vmatprep.mubr.bf16.mxu0 %v2283
    %2653 = vmatmul.mubr.bf16.gmra.mrb[0].mxu0 %v2254
    %v2654 = vpop.f32.mrb[0].mxu0
    %v2655 = vadd.f32 %v2466, %v2654
    %v2656 = vpop.f32.mrb[0].mxu0
    %v2657 = vpop.f32.mrb[0].mxu0
    %v2658 = vadd.f32 %v2466, %v2657
    %v2659 = vpop.f32.mrb[0].mxu0
    %2660 = vmatprep.mubr.bf16.mxu0 %v2291
    %2661 = vmatmul.mubr.bf16.gmra.mrb[0].mxu0 %v2255
    %v2662 = vpop.f32.mrb[0].mxu0
    %v2663 = vadd.f32 %v2466, %v2662
    %v2664 = vpop.f32.mrb[0].mxu0
    %v2665 = vpop.f32.mrb[0].mxu0
    %v2666 = vadd.f32 %v2466, %v2665
    %v2667 = vpop.f32.mrb[0].mxu0
    %2668 = vmatprep.mubr.bf16.mxu0 %v2299
    %2669 = vmatmul.mubr.bf16.gmra.mrb[0].mxu0 %v2256
    %v2670 = vpop.f32.mrb[0].mxu0
    %v2671 = vadd.f32 %v2466, %v2670
    %v2672 = vpop.f32.mrb[0].mxu0
    %v2673 = vpop.f32.mrb[0].mxu0
    %v2674 = vadd.f32 %v2466, %v2673
    %v2675 = vpop.f32.mrb[0].mxu0
    %2676 = vmatprep.mubr.bf16.mxu0 %v2368
    %2677 = vmatmul.mubr.bf16.gmra.mrb[0].mxu0 %v2346
    %v2678 = vpop.f32.mrb[0].mxu0
    %v2679 = vadd.f32 %v2466, %v2678
    %v2680 = vpop.f32.mrb[0].mxu0
    %v2681 = vpop.f32.mrb[0].mxu0
    %v2682 = vadd.f32 %v2466, %v2681
    %v2683 = vpop.f32.mrb[0].mxu0
    %2684 = vmatprep.mubr.bf16.mxu0 %v2376
    %2685 = vmatmul.mubr.bf16.gmra.mrb[0].mxu0 %v2347
    %v2686 = vpop.f32.mrb[0].mxu0
    %v2687 = vadd.f32 %v2466, %v2686
    %v2688 = vpop.f32.mrb[0].mxu0
    %v2689 = vpop.f32.mrb[0].mxu0
    %v2690 = vadd.f32 %v2466, %v2689
    %v2691 = vpop.f32.mrb[0].mxu0
    %2692 = vmatprep.mubr.bf16.mxu0 %v2384
    %2693 = vmatmul.mubr.bf16.gmra.mrb[0].mxu0 %v2348
    %v2694 = vpop.f32.mrb[0].mxu0
    %v2695 = vadd.f32 %v2466, %v2694
    %v2696 = vpop.f32.mrb[0].mxu0
    %v2697 = vpop.f32.mrb[0].mxu0
    %v2698 = vadd.f32 %v2466, %v2697
    %v2699 = vpop.f32.mrb[0].mxu0
    %2700 = vmatprep.mubr.bf16.mxu0 %v2392
    %2701 = vmatmul.mubr.bf16.gmra.mrb[0].mxu0 %v2349
    %v2702 = vpop.f32.mrb[0].mxu0
    %v2703 = vadd.f32 %v2466, %v2702
    %v2704 = vpop.f32.mrb[0].mxu0
    %v2705 = vpop.f32.mrb[0].mxu0
    %v2706 = vadd.f32 %v2466, %v2705
    %v2707 = vpop.f32.mrb[0].mxu0
    %2708 = vdwg.mxu0
    %2709 = vmatprep.subr.bf16.mxu0 0
    %2710 = vmatpush1.bf16.msra.mxu0 %v2580
    %2711 = vmatprep.subr.bf16.mxu0 0
    %2712 = vmatpush1.bf16.msra.mxu0 %v2581
    %2713 = vmatprep.subr.bf16.mxu0 0
    %2714 = vmatpush1.bf16.msra.mxu0 %v2582
    %2715 = vmatprep.subr.bf16.mxu0 0
    %2716 = vmatpush1.bf16.msra.mxu0 %v2583
    %2717 = vmatprep.subr.bf16.mxu0 0
    %2718 = vmatpush1.bf16.msra.mxu0 %v2584
    %2719 = vmatprep.subr.bf16.mxu0 0
    %2720 = vmatpush1.bf16.msra.mxu0 %v2585
    %2721 = vmatprep.subr.bf16.mxu0 0
    %2722 = vmatpush1.bf16.msra.mxu0 %v2586
    %2723 = vmatprep.subr.bf16.mxu0 0
    %2724 = vmatpush1.bf16.msra.mxu0 %v2587
    %2725 = vmatprep.subr.bf16.mxu0 0
    %2726 = vmatpush1.bf16.msra.mxu0 0
    %2727 = vmatprep.subr.bf16.mxu0 0
    %2728 = vmatpush1.bf16.msra.mxu0 0
    %2729 = vmatprep.subr.bf16.mxu0 0
    %2730 = vmatpush1.bf16.msra.mxu0 0
    %2731 = vmatprep.subr.bf16.mxu0 0
    %2732 = vmatpush1.bf16.msra.mxu0 0
    %2733 = vmatprep.subr.bf16.mxu0 0
    %2734 = vmatpush1.bf16.msra.mxu0 0
    %2735 = vmatprep.subr.bf16.mxu0 0
    %2736 = vmatpush1.bf16.msra.mxu0 0
    %2737 = vmatprep.subr.bf16.mxu0 0
    %2738 = vmatpush1.bf16.msra.mxu0 0
    %2739 = vmatprep.subr.bf16.mxu0 0
    %2740 = vmatpush1.bf16.msra.mxu0 0
    %2741 = vmatprep.mubr.bf16.mxu0 0
    %2742 = vmatmul.mubr.bf16.gmra.mrb[0].mxu0 %v2309
    %v2743 = vpop.f32.mrb[0].mxu0
    %v2744 = vadd.f32 %v2647, %v2743
    %v2745 = vpop.f32.mrb[0].mxu0
    %v2746 = vpop.f32.mrb[0].mxu0
    %v2747 = vadd.f32 %v2650, %v2746
    %v2748 = vpop.f32.mrb[0].mxu0
    %2749 = vmatprep.mubr.bf16.mxu0 0
    %2750 = vmatmul.mubr.bf16.gmra.mrb[0].mxu0 %v2311
    %v2751 = vpop.f32.mrb[0].mxu0
    %v2752 = vadd.f32 %v2655, %v2751
    %v2753 = vpop.f32.mrb[0].mxu0
    %v2754 = vpop.f32.mrb[0].mxu0
    %v2755 = vadd.f32 %v2658, %v2754
    %v2756 = vpop.f32.mrb[0].mxu0
    %2757 = vmatprep.mubr.bf16.mxu0 0
    %2758 = vmatmul.mubr.bf16.gmra.mrb[0].mxu0 %v2313
    %v2759 = vpop.f32.mrb[0].mxu0
    %v2760 = vadd.f32 %v2663, %v2759
    %v2761 = vpop.f32.mrb[0].mxu0
    %v2762 = vpop.f32.mrb[0].mxu0
    %v2763 = vadd.f32 %v2666, %v2762
    %v2764 = vpop.f32.mrb[0].mxu0
    %2765 = vmatprep.mubr.bf16.mxu0 0
    %2766 = vmatmul.mubr.bf16.gmra.mrb[0].mxu0 %v2315
    %v2767 = vpop.f32.mrb[0].mxu0
    %v2768 = vadd.f32 %v2671, %v2767
    %v2769 = vpop.f32.mrb[0].mxu0
    %v2770 = vpop.f32.mrb[0].mxu0
    %v2771 = vadd.f32 %v2674, %v2770
    %v2772 = vpop.f32.mrb[0].mxu0
    %2773 = vmatprep.mubr.bf16.mxu0 0
    %2774 = vmatmul.mubr.bf16.gmra.mrb[0].mxu0 %v2402
    %v2775 = vpop.f32.mrb[0].mxu0
    %v2776 = vadd.f32 %v2679, %v2775
    %v2777 = vpop.f32.mrb[0].mxu0
    %v2778 = vpop.f32.mrb[0].mxu0
    %v2779 = vadd.f32 %v2682, %v2778
    %v2780 = vpop.f32.mrb[0].mxu0
    %2781 = vmatprep.mubr.bf16.mxu0 0
    %2782 = vmatmul.mubr.bf16.gmra.mrb[0].mxu0 %v2404
    %v2783 = vpop.f32.mrb[0].mxu0
    %v2784 = vadd.f32 %v2687, %v2783
    %v2785 = vpop.f32.mrb[0].mxu0
    %v2786 = vpop.f32.mrb[0].mxu0
    %v2787 = vadd.f32 %v2690, %v2786
    %v2788 = vpop.f32.mrb[0].mxu0
    %2789 = vmatprep.mubr.bf16.mxu0 0
    %2790 = vmatmul.mubr.bf16.gmra.mrb[0].mxu0 %v2406
    %v2791 = vpop.f32.mrb[0].mxu0
    %v2792 = vadd.f32 %v2695, %v2791
    %v2793 = vpop.f32.mrb[0].mxu0
    %v2794 = vpop.f32.mrb[0].mxu0
    %v2795 = vadd.f32 %v2698, %v2794
    %v2796 = vpop.f32.mrb[0].mxu0
    %2797 = vmatprep.mubr.bf16.mxu0 0
    %2798 = vmatmul.mubr.bf16.gmra.mrb[0].mxu0 %v2408
    %v2799 = vpop.f32.mrb[0].mxu0
    %v2800 = vadd.f32 %v2703, %v2799
    %v2801 = vpop.f32.mrb[0].mxu0
    %v2802 = vpop.f32.mrb[0].mxu0
    %v2803 = vadd.f32 %v2706, %v2802
    %v2804 = vpop.f32.mrb[0].mxu0
    %2805 = vdwg.mxu0
    %v2806 = vmax.f32 %v2744, 0.0
    %v2807 = vmax.f32 %v2747, 0.0
    %v2808 = vmax.f32 %v2752, 0.0
    %v2809 = vmax.f32 %v2755, 0.0
    %v2810 = vmax.f32 %v2760, 0.0
    %v2811 = vmax.f32 %v2763, 0.0
    %v2812 = vmax.f32 %v2768, 0.0
    %v2813 = vmax.f32 %v2771, 0.0
    %v2814 = vmax.f32 %v2776, 0.0
    %v2815 = vmax.f32 %v2779, 0.0
    %v2816 = vmax.f32 %v2784, 0.0
    %v2817 = vmax.f32 %v2787, 0.0
    %v2818 = vmax.f32 %v2792, 0.0
    %v2819 = vmax.f32 %v2795, 0.0
    %v2820 = vmax.f32 %v2800, 0.0
    %v2821 = vmax.f32 %v2803, 0.0
    %2822 = vst [vmem:[#allocation9] sm:$0xff] %v2806
    %2823 = vst [vmem:[#allocation9 + $0x8] sm:$0xff] %v2807
    %2824 = vst [vmem:[#allocation9 + $0x10] sm:$0xff] %v2808
    %2825 = vst [vmem:[#allocation9 + $0x18] sm:$0xff] %v2809
    %2826 = vst [vmem:[#allocation9 + $0x20] sm:$0xff] %v2810
    %2827 = vst [vmem:[#allocation9 + $0x28] sm:$0xff] %v2811
    %2828 = vst [vmem:[#allocation9 + $0x30] sm:$0xff] %v2812
    %2829 = vst [vmem:[#allocation9 + $0x38] sm:$0xff] %v2813
    %s2830 = scalar_lea.vmem [#allocation9], 64
    %2831 = vst [vmem:[%s2830] sm:$0xff] %v2814
    %2832 = vst [vmem:[%s2830 + $0x8] sm:$0xff] %v2815
    %2833 = vst [vmem:[%s2830 + $0x10] sm:$0xff] %v2816
    %2834 = vst [vmem:[%s2830 + $0x18] sm:$0xff] %v2817
    %2835 = vst [vmem:[%s2830 + $0x20] sm:$0xff] %v2818
    %2836 = vst [vmem:[%s2830 + $0x28] sm:$0xff] %v2819
    %2837 = vst [vmem:[%s2830 + $0x30] sm:$0xff] %v2820
    %2838 = vst [vmem:[%s2830 + $0x38] sm:$0xff] %v2821
    // Predicated region
    $region38: #{cnn_feature_extractor.1} parent=1 // pred_check
      _
    $region39: #{cnn_feature_extractor.1} parent=1 // pred_check_branch
      %2840 = sbr.rel (0) target = $region41
    $region40: #{cnn_feature_extractor.1} parent=1 // pred_region
      %s2842 = ssub.s32 2048, 2048
      %2843 = vsyncadd [#allocation6], %s2842
      %s2844 = sshll.u32 [#allocation9], 4
      %s2845 = int_to_ptr.vmem [resolvable:$true] %s2844
      %2850 = dma.vmem_to_hbm [thread:$0]  %s2845, 2048, %s7, [#allocation6], 128, 128, 8
    $region41: #{cnn_feature_extractor.1} parent=1 // pred_fallthru
      _
    // Predicated region
    $region42: #{cnn_feature_extractor.1} parent=1 // pred_check
      _
    $region43: #{cnn_feature_extractor.1} parent=1 // pred_check_branch
      %2852 = sbr.rel (0) target = $region45
    $region44: #{cnn_feature_extractor.1} parent=1 // pred_region
      %2853 = dma.done [#allocation6], 2048
    $region45: #{cnn_feature_extractor.1} parent=1 // pred_fallthru
      _
    %2854 = vsyncpa [#allocation5], 1
    %2855 = vsyncpa [#allocation8], 1
    %2856 = vsyncpa [#allocation6], 1

</llo_original>
